<compile_context>
chip_gen: v6e
topology: v6e:2x2x1
jax: 0.10.0
libtpu: 0.0.40
codegen_flags: <defaults>
</compile_context>

<pallas_src>
import functools

import jax
import jax.numpy as jnp
from jax import lax
from jax.experimental import pallas as pl
from jax.experimental.pallas import tpu as pltpu


def _round_up(n, m):
    return ((n + m - 1) // m) * m


def _largest_divisor_leq(n, cap):
    for d in range(min(n, cap), 0, -1):
        if n % d == 0:
            return d
    return 1


# ---------------------------------------------------------------------------
# Pallas LSTM recurrence kernel (only the serial part: h @ W_hh^T + gates)
# ---------------------------------------------------------------------------
def _lstm_kernel(gx_ref, whh_ref, out_ref, hn_ref, cn_ref, h_sc, c_sc, *, hp, tb):
    """One grid step == TB timesteps for one batch block. h/c live in VMEM scratch."""
    t_blk = pl.program_id(1)

    @pl.when(t_blk == 0)
    def _init():
        h_sc[...] = jnp.zeros_like(h_sc)
        c_sc[...] = jnp.zeros_like(c_sc)

    whh = whh_ref[...]                     # (Hp, 4*Hp) bf16, resident across the grid

    def step(i, carry):
        h_prev, c_prev = carry             # f32 (BB, Hp)
        # gates_x (precomputed, bias included) + recurrent projection (bf16 MXU, f32 acc)
        gates = gx_ref[i] + jnp.dot(h_prev.astype(whh.dtype), whh,
                                    preferred_element_type=jnp.float32)
        # PyTorch LSTM gate order: input, forget, cell(g), output.
        # Each gate sits in its own 128-lane-aligned Hp-wide region -> aligned slices.
        i_g = jax.nn.sigmoid(gates[:, 0 * hp:1 * hp])
        f_g = jax.nn.sigmoid(gates[:, 1 * hp:2 * hp])
        g_g = jnp.tanh(gates[:, 2 * hp:3 * hp])
        o_g = jax.nn.sigmoid(gates[:, 3 * hp:4 * hp])
        c_new = f_g * c_prev + i_g * g_g
        h_new = o_g * jnp.tanh(c_new)
        out_ref[i] = h_new.astype(out_ref.dtype)
        return h_new, c_new

    h_f, c_f = lax.fori_loop(0, tb, step, (h_sc[...], c_sc[...]), unroll=True)
    h_sc[...] = h_f
    c_sc[...] = c_f

    @pl.when(t_blk == pl.num_programs(1) - 1)
    def _finalize():
        hn_ref[...] = h_f.astype(hn_ref.dtype)
        cn_ref[...] = c_f.astype(cn_ref.dtype)


def lstm_recurrence_pallas(gates_x, w_hh_t_p, *, hidden_pad, max_time_block=16):
    """gates_x: (T, Bp, 4*Hp) f32 (bias already folded in).  w_hh_t_p: (Hp, 4*Hp) bf16."""
    T, Bp, G4 = gates_x.shape
    Hp = hidden_pad
    assert G4 == 4 * Hp and Bp % 8 == 0

    TB = _largest_divisor_leq(T, max_time_block)   # time steps per grid step
    NT = T // TB
    NB = 2 if (Bp % 16 == 0) else 1                # batch blocks ("parallel" -> v7x megacore)
    BB = Bp // NB

    kernel = functools.partial(_lstm_kernel, hp=Hp, tb=TB)

    outputs, h_n, c_n = pl.pallas_call(
        kernel,
        out_shape=(
            jax.ShapeDtypeStruct((T, Bp, Hp), jnp.float32),
            jax.ShapeDtypeStruct((Bp, Hp), jnp.float32),
            jax.ShapeDtypeStruct((Bp, Hp), jnp.float32),
        ),
        grid_spec=pltpu.PrefetchScalarGridSpec(
            num_scalar_prefetch=0,
            grid=(NB, NT),                                       # (batch, time)
            in_specs=[
                pl.BlockSpec((TB, BB, 4 * Hp), lambda b, t: (t, b, 0)),   # gates_x block
                pl.BlockSpec((Hp, 4 * Hp), lambda b, t: (0, 0)),          # W_hh^T resident
            ],
            out_specs=[
                pl.BlockSpec((TB, BB, Hp), lambda b, t: (t, b, 0)),       # per-step h
                pl.BlockSpec((BB, Hp), lambda b, t: (b, 0)),              # final h
                pl.BlockSpec((BB, Hp), lambda b, t: (b, 0)),              # final c
            ],
            scratch_shapes=[
                pltpu.VMEM((BB, Hp), jnp.float32),               # h carry
                pltpu.VMEM((BB, Hp), jnp.float32),               # c carry
            ],
        ),
        compiler_params=pltpu.CompilerParams(
            dimension_semantics=("parallel", "arbitrary"),       # batch ∥, time sequential
        ),
    )(gates_x, w_hh_t_p)
    return outputs, h_n, c_n


# ---------------------------------------------------------------------------
# Encoder module (deterministic synthetic params, mirrors the PyTorch __init__)
# ---------------------------------------------------------------------------
class EncoderPallas:
    def __init__(self, vocab_size, embed_size, hidden_size, num_encoder_layers=1,
                 dropout=0.0, cell_type="lstm", init_method="xavier", seed=0):
        assert cell_type.lower() == "lstm"
        assert num_encoder_layers == 1  # TODO(synk): stacked layers / GRU / vanilla RNN not implemented
        self.vocab_size = vocab_size
        self.embed_size = embed_size
        self.hidden_size = hidden_size
        self.hidden_pad = _round_up(hidden_size, 128)   # lane-aligned gate regions

        key = jax.random.PRNGKey(seed)
        k_emb, k_wih, k_whh, k_bih, k_bhh = jax.random.split(key, 5)

        gain = 5.0 / 3.0  # nn.init.calculate_gain('tanh')

        # Embedding: xavier_uniform_ (gain=1), fan_in=E, fan_out=V.
        limit = jnp.sqrt(6.0 / (embed_size + vocab_size))
        self.embedding = jax.random.uniform(
            k_emb, (vocab_size, embed_size), jnp.float32, -limit, limit)

        # LSTM weights: xavier_normal_ with tanh gain (init_method == 'xavier').
        def xavier_normal(k, shape):
            f_out, f_in = shape
            std = gain * jnp.sqrt(2.0 / (f_in + f_out))
            return std * jax.random.normal(k, shape, jnp.float32)

        w_ih = xavier_normal(k_wih, (4 * hidden_size, embed_size))   # PyTorch layout
        w_hh = xavier_normal(k_whh, (4 * hidden_size, hidden_size))
        # Biases: PyTorch default uniform(-1/sqrt(H), 1/sqrt(H)) (init only touches weights).
        b_lim = 1.0 / jnp.sqrt(jnp.float32(hidden_size))
        b_ih = jax.random.uniform(k_bih, (4 * hidden_size,), jnp.float32, -b_lim, b_lim)
        b_hh = jax.random.uniform(k_bhh, (4 * hidden_size,), jnp.float32, -b_lim, b_lim)

        # Raw f32 params (for the pure-JAX reference check).
        self._w_ih, self._w_hh, self._b_ih, self._b_hh = w_ih, w_hh, b_ih, b_hh

        # Padded / packed forms: each gate gets its own Hp-wide, 128-aligned column block.
        H, Hp, E = hidden_size, self.hidden_pad, embed_size
        w_ih_t, w_hh_t, b = w_ih.T, w_hh.T, b_ih + b_hh
        w_ih_t_p = jnp.zeros((E, 4 * Hp), jnp.float32)
        w_hh_t_p = jnp.zeros((Hp, 4 * Hp), jnp.float32)
        b_p = jnp.zeros((4 * Hp,), jnp.float32)
        for k in range(4):
            w_ih_t_p = w_ih_t_p.at[:, k * Hp:k * Hp + H].set(w_ih_t[:, k * H:(k + 1) * H])
            w_hh_t_p = w_hh_t_p.at[:H, k * Hp:k * Hp + H].set(w_hh_t[:, k * H:(k + 1) * H])
            b_p = b_p.at[k * Hp:k * Hp + H].set(b[k * H:(k + 1) * H])
        self.w_ih_t_p = w_ih_t_p.astype(jnp.bfloat16)   # bf16 MXU inputs
        self.w_hh_t_p = w_hh_t_p.astype(jnp.bfloat16)
        self.bias_p = b_p                                # f32, folded into gates_x

    def __call__(self, x):
        # x: (B, T) int32 token ids
        B, T = x.shape
        E, H, Hp = self.embed_size, self.hidden_size, self.hidden_pad
        Bp = _round_up(B, 8)                             # sublane-aligned batch

        # Time-major embedding gather (no separate (B,T,E)->(T,B,E) transpose pass).
        emb_tbe = self.embedding[x.T]                    # (T, B, E) f32
        if Bp != B:
            emb_tbe = jnp.pad(emb_tbe, ((0, 0), (0, Bp - B), (0, 0)))

        # Hoisted input projection + bias: one big parallel bf16 matmul (f32 accumulate).
        gates_x = jnp.dot(emb_tbe.reshape(T * Bp, E).astype(jnp.bfloat16),
                          self.w_ih_t_p, preferred_element_type=jnp.float32)
        gates_x = (gates_x + self.bias_p).reshape(T, Bp, 4 * Hp)

        outputs_tbh, h_n, c_n = lstm_recurrence_pallas(
            gates_x, self.w_hh_t_p, hidden_pad=Hp)

        outputs = jnp.transpose(outputs_tbh[:, :B, :H], (1, 0, 2))   # (B, T, H) batch_first
        hidden = (h_n[None, :B, :H], c_n[None, :B, :H])              # (1, B, H) each
        return outputs, hidden


# ---------------------------------------------------------------------------
# Pure-JAX f32 reference (PyTorch nn.LSTM semantics) for a correctness check
# ---------------------------------------------------------------------------
def _reference_forward(enc: EncoderPallas, x):
    emb = enc.embedding[x]                     # (B, T, E)
    B, T, _ = emb.shape
    H = enc.hidden_size
    w_ih, w_hh, b = enc._w_ih, enc._w_hh, enc._b_ih + enc._b_hh
    h = jnp.zeros((B, H), jnp.float32)
    c = jnp.zeros((B, H), jnp.float32)
    outs = []
    for t in range(T):
        g = emb[:, t] @ w_ih.T + h @ w_hh.T + b
        i = jax.nn.sigmoid(g[:, 0 * H:1 * H])
        f = jax.nn.sigmoid(g[:, 1 * H:2 * H])
        gg = jnp.tanh(g[:, 2 * H:3 * H])
        o = jax.nn.sigmoid(g[:, 3 * H:4 * H])
        c = f * c + i * gg
        h = o * jnp.tanh(c)
        outs.append(h)
    return jnp.stack(outs, axis=1), h, c


if __name__ == "__main__":
    VOCAB, EMBED, HIDDEN = 16, 32, 32
    B, T = 2, 8

    enc = EncoderPallas(VOCAB, EMBED, HIDDEN, num_encoder_layers=1,
                        dropout=0.0, cell_type="lstm", init_method="xavier", seed=0)

    key = jax.random.PRNGKey(0)
    x = jax.random.randint(key, (B, T), 0, VOCAB, dtype=jnp.int32)

    outputs, (h_n, c_n) = enc(x)
    jax.block_until_ready((outputs, h_n, c_n))

    assert outputs.shape == (B, T, HIDDEN)
    assert h_n.shape == (1, B, HIDDEN)
    assert c_n.shape == (1, B, HIDDEN)

    # Numerical check against a pure-JAX f32 LSTM (bf16 MXU inputs -> loose tolerance).
    ref_out, ref_h, ref_c = _reference_forward(enc, x)
    assert float(jnp.max(jnp.abs(outputs - ref_out))) < 5e-2
    assert float(jnp.max(jnp.abs(h_n[0] - ref_h))) < 5e-2
    assert float(jnp.max(jnp.abs(c_n[0] - ref_c))) < 5e-2

    print("KERNEL_OK")
</pallas_src>

<mosaic_0001>
module attributes {stable_mosaic.version = 11 : i64} {
  func.func @_lstm_kernel(%arg0: i32, %arg1: i32, %arg2: memref<8x8x512xf32, #tpu.memory_space<vmem>>, %arg3: memref<128x512xbf16, #tpu.memory_space<vmem>>, %arg4: memref<8x8x128xf32, #tpu.memory_space<vmem>>, %arg5: memref<8x128xf32, #tpu.memory_space<vmem>>, %arg6: memref<8x128xf32, #tpu.memory_space<vmem>>, %arg7: memref<8x128xf32, #tpu.memory_space<vmem>>, %arg8: memref<8x128xf32, #tpu.memory_space<vmem>>) attributes {dimension_semantics = [#tpu.dimension_semantics<parallel>, #tpu.dimension_semantics<arbitrary>], iteration_bounds = array<i64: 1, 1>, scalar_prefetch = 0 : i64, scratch_operands = 2 : i64, tpu.core_type = #tpu.core_type<tc>, window_params = [{transform_indices = @transform_0, window_bounds = array<i64: 8, 8, 512>}, {pipeline_mode = #tpu.pipeline_mode<synchronous>, transform_indices = @transform_1, window_bounds = array<i64: 128, 512>}, {transform_indices = @transform_2, window_bounds = array<i64: 8, 8, 128>}, {transform_indices = @transform_3, window_bounds = array<i64: 8, 128>}, {transform_indices = @transform_4, window_bounds = array<i64: 8, 128>}]} {
    %c0_i32 = arith.constant 0 : i32
    %0 = arith.cmpi eq, %arg1, %c0_i32 : i32
    %1 = arith.extui %0 : i1 to i32
    %c0_i32_0 = arith.constant 0 : i32
    %2 = arith.cmpi ne, %1, %c0_i32_0 : i32
    scf.if %2 {
      %cst_76 = arith.constant 0.000000e+00 : f32
      %291 = vector.broadcast %cst_76 : f32 to vector<8x128xf32>
      %c0_77 = arith.constant 0 : index
      %c0_78 = arith.constant 0 : index
      %292 = vector.load %arg7[%c0_77, %c0_78] : memref<8x128xf32, #tpu.memory_space<vmem>>, vector<8x128xf32>
      tpu.vector_store %arg7[%c0_77, %c0_78], %291 {strides = array<i32>} : memref<8x128xf32, #tpu.memory_space<vmem>>, vector<8x128xf32>,
      %cst_79 = arith.constant 0.000000e+00 : f32
      %293 = vector.broadcast %cst_79 : f32 to vector<8x128xf32>
      %c0_80 = arith.constant 0 : index
      %c0_81 = arith.constant 0 : index
      %294 = vector.load %arg8[%c0_80, %c0_81] : memref<8x128xf32, #tpu.memory_space<vmem>>, vector<8x128xf32>
      tpu.vector_store %arg8[%c0_80, %c0_81], %293 {strides = array<i32>} : memref<8x128xf32, #tpu.memory_space<vmem>>, vector<8x128xf32>,
    } else {
    }
    %c0 = arith.constant 0 : index
    %c0_1 = arith.constant 0 : index
    %3 = vector.load %arg3[%c0, %c0_1] : memref<128x512xbf16, #tpu.memory_space<vmem>>, vector<128x512xbf16>
    %c0_2 = arith.constant 0 : index
    %c0_3 = arith.constant 0 : index
    %4 = vector.load %arg7[%c0_2, %c0_3] : memref<8x128xf32, #tpu.memory_space<vmem>>, vector<8x128xf32>
    %c0_4 = arith.constant 0 : index
    %c0_5 = arith.constant 0 : index
    %5 = vector.load %arg8[%c0_4, %c0_5] : memref<8x128xf32, #tpu.memory_space<vmem>>, vector<8x128xf32>
    %c0_i32_6 = arith.constant 0 : i32
    %6 = arith.index_cast %c0_i32_6 : i32 to index
    %c0_7 = arith.constant 0 : index
    %c0_8 = arith.constant 0 : index
    %7 = vector.load %arg2[%6, %c0_7, %c0_8] : memref<8x8x512xf32, #tpu.memory_space<vmem>>, vector<1x8x512xf32>
    %8 = vector.shape_cast %7 : vector<1x8x512xf32> to vector<8x512xf32>
    %9 = arith.truncf %4 : vector<8x128xf32> to vector<8x128xbf16>
    %cst = arith.constant dense<0.000000e+00> : vector<8x512xf32>
    %10 = tpu.matmul %9, %3, %cst {dimension_numbers = #tpu.dot_dimension_numbers<[1], [0], [0], [1], [0, 0, 1, 1], [], []>} : vector<8x128xbf16>, vector<128x512xbf16>, vector<8x512xf32> -> vector<8x512xf32>
    %11 = arith.addf %8, %10 : vector<8x512xf32>
    %12 = vector.extract_strided_slice %11 {offsets = [0, 0], sizes = [8, 128], strides = [1, 1]} : vector<8x512xf32> to vector<8x128xf32>
    %13 = arith.negf %12 : vector<8x128xf32>
    %14 = math.exp %13 : vector<8x128xf32>
    %cst_9 = arith.constant 1.000000e+00 : f32
    %15 = vector.broadcast %cst_9 : f32 to vector<8x128xf32>
    %16 = arith.addf %15, %14 : vector<8x128xf32>
    %17 = arith.divf %15, %16 : vector<8x128xf32>
    %18 = vector.extract_strided_slice %11 {offsets = [0, 128], sizes = [8, 128], strides = [1, 1]} : vector<8x512xf32> to vector<8x128xf32>
    %19 = arith.negf %18 : vector<8x128xf32>
    %20 = math.exp %19 : vector<8x128xf32>
    %cst_10 = arith.constant 1.000000e+00 : f32
    %21 = vector.broadcast %cst_10 : f32 to vector<8x128xf32>
    %22 = arith.addf %21, %20 : vector<8x128xf32>
    %23 = arith.divf %21, %22 : vector<8x128xf32>
    %24 = vector.extract_strided_slice %11 {offsets = [0, 256], sizes = [8, 128], strides = [1, 1]} : vector<8x512xf32> to vector<8x128xf32>
    %25 = math.tanh %24 : vector<8x128xf32>
    %26 = vector.extract_strided_slice %11 {offsets = [0, 384], sizes = [8, 128], strides = [1, 1]} : vector<8x512xf32> to vector<8x128xf32>
    %27 = arith.negf %26 : vector<8x128xf32>
    %28 = math.exp %27 : vector<8x128xf32>
    %cst_11 = arith.constant 1.000000e+00 : f32
    %29 = vector.broadcast %cst_11 : f32 to vector<8x128xf32>
    %30 = arith.addf %29, %28 : vector<8x128xf32>
    %31 = arith.divf %29, %30 : vector<8x128xf32>
    %32 = arith.mulf %23, %5 : vector<8x128xf32>
    %33 = arith.mulf %17, %25 : vector<8x128xf32>
    %34 = arith.addf %32, %33 : vector<8x128xf32>
    %35 = math.tanh %34 : vector<8x128xf32>
    %36 = arith.mulf %31, %35 : vector<8x128xf32>
    %37 = arith.index_cast %c0_i32_6 : i32 to index
    %c0_12 = arith.constant 0 : index
    %c0_13 = arith.constant 0 : index
    %38 = vector.load %arg4[%37, %c0_12, %c0_13] : memref<8x8x128xf32, #tpu.memory_space<vmem>>, vector<1x8x128xf32>
    %39 = vector.shape_cast %38 : vector<1x8x128xf32> to vector<8x128xf32>
    %40 = vector.shape_cast %36 : vector<8x128xf32> to vector<1x8x128xf32>
    tpu.vector_store %arg4[%37, %c0_12, %c0_13], %40 {strides = array<i32>} : memref<8x8x128xf32, #tpu.memory_space<vmem>>, vector<1x8x128xf32>,
    %c1_i32 = arith.constant 1 : i32
    %41 = arith.index_cast %c1_i32 : i32 to index
    %c0_14 = arith.constant 0 : index
    %c0_15 = arith.constant 0 : index
    %42 = vector.load %arg2[%41, %c0_14, %c0_15] : memref<8x8x512xf32, #tpu.memory_space<vmem>>, vector<1x8x512xf32>
    %43 = vector.shape_cast %42 : vector<1x8x512xf32> to vector<8x512xf32>
    %44 = arith.truncf %36 : vector<8x128xf32> to vector<8x128xbf16>
    %cst_16 = arith.constant dense<0.000000e+00> : vector<8x512xf32>
    %45 = tpu.matmul %44, %3, %cst_16 {dimension_numbers = #tpu.dot_dimension_numbers<[1], [0], [0], [1], [0, 0, 1, 1], [], []>} : vector<8x128xbf16>, vector<128x512xbf16>, vector<8x512xf32> -> vector<8x512xf32>
    %46 = arith.addf %43, %45 : vector<8x512xf32>
    %47 = vector.extract_strided_slice %46 {offsets = [0, 0], sizes = [8, 128], strides = [1, 1]} : vector<8x512xf32> to vector<8x128xf32>
    %48 = arith.negf %47 : vector<8x128xf32>
    %49 = math.exp %48 : vector<8x128xf32>
    %cst_17 = arith.constant 1.000000e+00 : f32
    %50 = vector.broadcast %cst_17 : f32 to vector<8x128xf32>
    %51 = arith.addf %50, %49 : vector<8x128xf32>
    %52 = arith.divf %50, %51 : vector<8x128xf32>
    %53 = vector.extract_strided_slice %46 {offsets = [0, 128], sizes = [8, 128], strides = [1, 1]} : vector<8x512xf32> to vector<8x128xf32>
    %54 = arith.negf %53 : vector<8x128xf32>
    %55 = math.exp %54 : vector<8x128xf32>
    %cst_18 = arith.constant 1.000000e+00 : f32
    %56 = vector.broadcast %cst_18 : f32 to vector<8x128xf32>
    %57 = arith.addf %56, %55 : vector<8x128xf32>
    %58 = arith.divf %56, %57 : vector<8x128xf32>
    %59 = vector.extract_strided_slice %46 {offsets = [0, 256], sizes = [8, 128], strides = [1, 1]} : vector<8x512xf32> to vector<8x128xf32>
    %60 = math.tanh %59 : vector<8x128xf32>
    %61 = vector.extract_strided_slice %46 {offsets = [0, 384], sizes = [8, 128], strides = [1, 1]} : vector<8x512xf32> to vector<8x128xf32>
    %62 = arith.negf %61 : vector<8x128xf32>
    %63 = math.exp %62 : vector<8x128xf32>
    %cst_19 = arith.constant 1.000000e+00 : f32
    %64 = vector.broadcast %cst_19 : f32 to vector<8x128xf32>
    %65 = arith.addf %64, %63 : vector<8x128xf32>
    %66 = arith.divf %64, %65 : vector<8x128xf32>
    %67 = arith.mulf %58, %34 : vector<8x128xf32>
    %68 = arith.mulf %52, %60 : vector<8x128xf32>
    %69 = arith.addf %67, %68 : vector<8x128xf32>
    %70 = math.tanh %69 : vector<8x128xf32>
    %71 = arith.mulf %66, %70 : vector<8x128xf32>
    %72 = arith.index_cast %c1_i32 : i32 to index
    %c0_20 = arith.constant 0 : index
    %c0_21 = arith.constant 0 : index
    %73 = vector.load %arg4[%72, %c0_20, %c0_21] : memref<8x8x128xf32, #tpu.memory_space<vmem>>, vector<1x8x128xf32>
    %74 = vector.shape_cast %73 : vector<1x8x128xf32> to vector<8x128xf32>
    %75 = vector.shape_cast %71 : vector<8x128xf32> to vector<1x8x128xf32>
    tpu.vector_store %arg4[%72, %c0_20, %c0_21], %75 {strides = array<i32>} : memref<8x8x128xf32, #tpu.memory_space<vmem>>, vector<1x8x128xf32>,
    %c2_i32 = arith.constant 2 : i32
    %76 = arith.index_cast %c2_i32 : i32 to index
    %c0_22 = arith.constant 0 : index
    %c0_23 = arith.constant 0 : index
    %77 = vector.load %arg2[%76, %c0_22, %c0_23] : memref<8x8x512xf32, #tpu.memory_space<vmem>>, vector<1x8x512xf32>
    %78 = vector.shape_cast %77 : vector<1x8x512xf32> to vector<8x512xf32>
    %79 = arith.truncf %71 : vector<8x128xf32> to vector<8x128xbf16>
    %cst_24 = arith.constant dense<0.000000e+00> : vector<8x512xf32>
    %80 = tpu.matmul %79, %3, %cst_24 {dimension_numbers = #tpu.dot_dimension_numbers<[1], [0], [0], [1], [0, 0, 1, 1], [], []>} : vector<8x128xbf16>, vector<128x512xbf16>, vector<8x512xf32> -> vector<8x512xf32>
    %81 = arith.addf %78, %80 : vector<8x512xf32>
    %82 = vector.extract_strided_slice %81 {offsets = [0, 0], sizes = [8, 128], strides = [1, 1]} : vector<8x512xf32> to vector<8x128xf32>
    %83 = arith.negf %82 : vector<8x128xf32>
    %84 = math.exp %83 : vector<8x128xf32>
    %cst_25 = arith.constant 1.000000e+00 : f32
    %85 = vector.broadcast %cst_25 : f32 to vector<8x128xf32>
    %86 = arith.addf %85, %84 : vector<8x128xf32>
    %87 = arith.divf %85, %86 : vector<8x128xf32>
    %88 = vector.extract_strided_slice %81 {offsets = [0, 128], sizes = [8, 128], strides = [1, 1]} : vector<8x512xf32> to vector<8x128xf32>
    %89 = arith.negf %88 : vector<8x128xf32>
    %90 = math.exp %89 : vector<8x128xf32>
    %cst_26 = arith.constant 1.000000e+00 : f32
    %91 = vector.broadcast %cst_26 : f32 to vector<8x128xf32>
    %92 = arith.addf %91, %90 : vector<8x128xf32>
    %93 = arith.divf %91, %92 : vector<8x128xf32>
    %94 = vector.extract_strided_slice %81 {offsets = [0, 256], sizes = [8, 128], strides = [1, 1]} : vector<8x512xf32> to vector<8x128xf32>
    %95 = math.tanh %94 : vector<8x128xf32>
    %96 = vector.extract_strided_slice %81 {offsets = [0, 384], sizes = [8, 128], strides = [1, 1]} : vector<8x512xf32> to vector<8x128xf32>
    %97 = arith.negf %96 : vector<8x128xf32>
    %98 = math.exp %97 : vector<8x128xf32>
    %cst_27 = arith.constant 1.000000e+00 : f32
    %99 = vector.broadcast %cst_27 : f32 to vector<8x128xf32>
    %100 = arith.addf %99, %98 : vector<8x128xf32>
    %101 = arith.divf %99, %100 : vector<8x128xf32>
    %102 = arith.mulf %93, %69 : vector<8x128xf32>
    %103 = arith.mulf %87, %95 : vector<8x128xf32>
    %104 = arith.addf %102, %103 : vector<8x128xf32>
    %105 = math.tanh %104 : vector<8x128xf32>
    %106 = arith.mulf %101, %105 : vector<8x128xf32>
    %107 = arith.index_cast %c2_i32 : i32 to index
    %c0_28 = arith.constant 0 : index
    %c0_29 = arith.constant 0 : index
    %108 = vector.load %arg4[%107, %c0_28, %c0_29] : memref<8x8x128xf32, #tpu.memory_space<vmem>>, vector<1x8x128xf32>
    %109 = vector.shape_cast %108 : vector<1x8x128xf32> to vector<8x128xf32>
    %110 = vector.shape_cast %106 : vector<8x128xf32> to vector<1x8x128xf32>
    tpu.vector_store %arg4[%107, %c0_28, %c0_29], %110 {strides = array<i32>} : memref<8x8x128xf32, #tpu.memory_space<vmem>>, vector<1x8x128xf32>,
    %c3_i32 = arith.constant 3 : i32
    %111 = arith.index_cast %c3_i32 : i32 to index
    %c0_30 = arith.constant 0 : index
    %c0_31 = arith.constant 0 : index
    %112 = vector.load %arg2[%111, %c0_30, %c0_31] : memref<8x8x512xf32, #tpu.memory_space<vmem>>, vector<1x8x512xf32>
    %113 = vector.shape_cast %112 : vector<1x8x512xf32> to vector<8x512xf32>
    %114 = arith.truncf %106 : vector<8x128xf32> to vector<8x128xbf16>
    %cst_32 = arith.constant dense<0.000000e+00> : vector<8x512xf32>
    %115 = tpu.matmul %114, %3, %cst_32 {dimension_numbers = #tpu.dot_dimension_numbers<[1], [0], [0], [1], [0, 0, 1, 1], [], []>} : vector<8x128xbf16>, vector<128x512xbf16>, vector<8x512xf32> -> vector<8x512xf32>
    %116 = arith.addf %113, %115 : vector<8x512xf32>
    %117 = vector.extract_strided_slice %116 {offsets = [0, 0], sizes = [8, 128], strides = [1, 1]} : vector<8x512xf32> to vector<8x128xf32>
    %118 = arith.negf %117 : vector<8x128xf32>
    %119 = math.exp %118 : vector<8x128xf32>
    %cst_33 = arith.constant 1.000000e+00 : f32
    %120 = vector.broadcast %cst_33 : f32 to vector<8x128xf32>
    %121 = arith.addf %120, %119 : vector<8x128xf32>
    %122 = arith.divf %120, %121 : vector<8x128xf32>
    %123 = vector.extract_strided_slice %116 {offsets = [0, 128], sizes = [8, 128], strides = [1, 1]} : vector<8x512xf32> to vector<8x128xf32>
    %124 = arith.negf %123 : vector<8x128xf32>
    %125 = math.exp %124 : vector<8x128xf32>
    %cst_34 = arith.constant 1.000000e+00 : f32
    %126 = vector.broadcast %cst_34 : f32 to vector<8x128xf32>
    %127 = arith.addf %126, %125 : vector<8x128xf32>
    %128 = arith.divf %126, %127 : vector<8x128xf32>
    %129 = vector.extract_strided_slice %116 {offsets = [0, 256], sizes = [8, 128], strides = [1, 1]} : vector<8x512xf32> to vector<8x128xf32>
    %130 = math.tanh %129 : vector<8x128xf32>
    %131 = vector.extract_strided_slice %116 {offsets = [0, 384], sizes = [8, 128], strides = [1, 1]} : vector<8x512xf32> to vector<8x128xf32>
    %132 = arith.negf %131 : vector<8x128xf32>
    %133 = math.exp %132 : vector<8x128xf32>
    %cst_35 = arith.constant 1.000000e+00 : f32
    %134 = vector.broadcast %cst_35 : f32 to vector<8x128xf32>
    %135 = arith.addf %134, %133 : vector<8x128xf32>
    %136 = arith.divf %134, %135 : vector<8x128xf32>
    %137 = arith.mulf %128, %104 : vector<8x128xf32>
    %138 = arith.mulf %122, %130 : vector<8x128xf32>
    %139 = arith.addf %137, %138 : vector<8x128xf32>
    %140 = math.tanh %139 : vector<8x128xf32>
    %141 = arith.mulf %136, %140 : vector<8x128xf32>
    %142 = arith.index_cast %c3_i32 : i32 to index
    %c0_36 = arith.constant 0 : index
    %c0_37 = arith.constant 0 : index
    %143 = vector.load %arg4[%142, %c0_36, %c0_37] : memref<8x8x128xf32, #tpu.memory_space<vmem>>, vector<1x8x128xf32>
    %144 = vector.shape_cast %143 : vector<1x8x128xf32> to vector<8x128xf32>
    %145 = vector.shape_cast %141 : vector<8x128xf32> to vector<1x8x128xf32>
    tpu.vector_store %arg4[%142, %c0_36, %c0_37], %145 {strides = array<i32>} : memref<8x8x128xf32, #tpu.memory_space<vmem>>, vector<1x8x128xf32>,
    %c4_i32 = arith.constant 4 : i32
    %146 = arith.index_cast %c4_i32 : i32 to index
    %c0_38 = arith.constant 0 : index
    %c0_39 = arith.constant 0 : index
    %147 = vector.load %arg2[%146, %c0_38, %c0_39] : memref<8x8x512xf32, #tpu.memory_space<vmem>>, vector<1x8x512xf32>
    %148 = vector.shape_cast %147 : vector<1x8x512xf32> to vector<8x512xf32>
    %149 = arith.truncf %141 : vector<8x128xf32> to vector<8x128xbf16>
    %cst_40 = arith.constant dense<0.000000e+00> : vector<8x512xf32>
    %150 = tpu.matmul %149, %3, %cst_40 {dimension_numbers = #tpu.dot_dimension_numbers<[1], [0], [0], [1], [0, 0, 1, 1], [], []>} : vector<8x128xbf16>, vector<128x512xbf16>, vector<8x512xf32> -> vector<8x512xf32>
    %151 = arith.addf %148, %150 : vector<8x512xf32>
    %152 = vector.extract_strided_slice %151 {offsets = [0, 0], sizes = [8, 128], strides = [1, 1]} : vector<8x512xf32> to vector<8x128xf32>
    %153 = arith.negf %152 : vector<8x128xf32>
    %154 = math.exp %153 : vector<8x128xf32>
    %cst_41 = arith.constant 1.000000e+00 : f32
    %155 = vector.broadcast %cst_41 : f32 to vector<8x128xf32>
    %156 = arith.addf %155, %154 : vector<8x128xf32>
    %157 = arith.divf %155, %156 : vector<8x128xf32>
    %158 = vector.extract_strided_slice %151 {offsets = [0, 128], sizes = [8, 128], strides = [1, 1]} : vector<8x512xf32> to vector<8x128xf32>
    %159 = arith.negf %158 : vector<8x128xf32>
    %160 = math.exp %159 : vector<8x128xf32>
    %cst_42 = arith.constant 1.000000e+00 : f32
    %161 = vector.broadcast %cst_42 : f32 to vector<8x128xf32>
    %162 = arith.addf %161, %160 : vector<8x128xf32>
    %163 = arith.divf %161, %162 : vector<8x128xf32>
    %164 = vector.extract_strided_slice %151 {offsets = [0, 256], sizes = [8, 128], strides = [1, 1]} : vector<8x512xf32> to vector<8x128xf32>
    %165 = math.tanh %164 : vector<8x128xf32>
    %166 = vector.extract_strided_slice %151 {offsets = [0, 384], sizes = [8, 128], strides = [1, 1]} : vector<8x512xf32> to vector<8x128xf32>
    %167 = arith.negf %166 : vector<8x128xf32>
    %168 = math.exp %167 : vector<8x128xf32>
    %cst_43 = arith.constant 1.000000e+00 : f32
    %169 = vector.broadcast %cst_43 : f32 to vector<8x128xf32>
    %170 = arith.addf %169, %168 : vector<8x128xf32>
    %171 = arith.divf %169, %170 : vector<8x128xf32>
    %172 = arith.mulf %163, %139 : vector<8x128xf32>
    %173 = arith.mulf %157, %165 : vector<8x128xf32>
    %174 = arith.addf %172, %173 : vector<8x128xf32>
    %175 = math.tanh %174 : vector<8x128xf32>
    %176 = arith.mulf %171, %175 : vector<8x128xf32>
    %177 = arith.index_cast %c4_i32 : i32 to index
    %c0_44 = arith.constant 0 : index
    %c0_45 = arith.constant 0 : index
    %178 = vector.load %arg4[%177, %c0_44, %c0_45] : memref<8x8x128xf32, #tpu.memory_space<vmem>>, vector<1x8x128xf32>
    %179 = vector.shape_cast %178 : vector<1x8x128xf32> to vector<8x128xf32>
    %180 = vector.shape_cast %176 : vector<8x128xf32> to vector<1x8x128xf32>
    tpu.vector_store %arg4[%177, %c0_44, %c0_45], %180 {strides = array<i32>} : memref<8x8x128xf32, #tpu.memory_space<vmem>>, vector<1x8x128xf32>,
    %c5_i32 = arith.constant 5 : i32
    %181 = arith.index_cast %c5_i32 : i32 to index
    %c0_46 = arith.constant 0 : index
    %c0_47 = arith.constant 0 : index
    %182 = vector.load %arg2[%181, %c0_46, %c0_47] : memref<8x8x512xf32, #tpu.memory_space<vmem>>, vector<1x8x512xf32>
    %183 = vector.shape_cast %182 : vector<1x8x512xf32> to vector<8x512xf32>
    %184 = arith.truncf %176 : vector<8x128xf32> to vector<8x128xbf16>
    %cst_48 = arith.constant dense<0.000000e+00> : vector<8x512xf32>
    %185 = tpu.matmul %184, %3, %cst_48 {dimension_numbers = #tpu.dot_dimension_numbers<[1], [0], [0], [1], [0, 0, 1, 1], [], []>} : vector<8x128xbf16>, vector<128x512xbf16>, vector<8x512xf32> -> vector<8x512xf32>
    %186 = arith.addf %183, %185 : vector<8x512xf32>
    %187 = vector.extract_strided_slice %186 {offsets = [0, 0], sizes = [8, 128], strides = [1, 1]} : vector<8x512xf32> to vector<8x128xf32>
    %188 = arith.negf %187 : vector<8x128xf32>
    %189 = math.exp %188 : vector<8x128xf32>
    %cst_49 = arith.constant 1.000000e+00 : f32
    %190 = vector.broadcast %cst_49 : f32 to vector<8x128xf32>
    %191 = arith.addf %190, %189 : vector<8x128xf32>
    %192 = arith.divf %190, %191 : vector<8x128xf32>
    %193 = vector.extract_strided_slice %186 {offsets = [0, 128], sizes = [8, 128], strides = [1, 1]} : vector<8x512xf32> to vector<8x128xf32>
    %194 = arith.negf %193 : vector<8x128xf32>
    %195 = math.exp %194 : vector<8x128xf32>
    %cst_50 = arith.constant 1.000000e+00 : f32
    %196 = vector.broadcast %cst_50 : f32 to vector<8x128xf32>
    %197 = arith.addf %196, %195 : vector<8x128xf32>
    %198 = arith.divf %196, %197 : vector<8x128xf32>
    %199 = vector.extract_strided_slice %186 {offsets = [0, 256], sizes = [8, 128], strides = [1, 1]} : vector<8x512xf32> to vector<8x128xf32>
    %200 = math.tanh %199 : vector<8x128xf32>
    %201 = vector.extract_strided_slice %186 {offsets = [0, 384], sizes = [8, 128], strides = [1, 1]} : vector<8x512xf32> to vector<8x128xf32>
    %202 = arith.negf %201 : vector<8x128xf32>
    %203 = math.exp %202 : vector<8x128xf32>
    %cst_51 = arith.constant 1.000000e+00 : f32
    %204 = vector.broadcast %cst_51 : f32 to vector<8x128xf32>
    %205 = arith.addf %204, %203 : vector<8x128xf32>
    %206 = arith.divf %204, %205 : vector<8x128xf32>
    %207 = arith.mulf %198, %174 : vector<8x128xf32>
    %208 = arith.mulf %192, %200 : vector<8x128xf32>
    %209 = arith.addf %207, %208 : vector<8x128xf32>
    %210 = math.tanh %209 : vector<8x128xf32>
    %211 = arith.mulf %206, %210 : vector<8x128xf32>
    %212 = arith.index_cast %c5_i32 : i32 to index
    %c0_52 = arith.constant 0 : index
    %c0_53 = arith.constant 0 : index
    %213 = vector.load %arg4[%212, %c0_52, %c0_53] : memref<8x8x128xf32, #tpu.memory_space<vmem>>, vector<1x8x128xf32>
    %214 = vector.shape_cast %213 : vector<1x8x128xf32> to vector<8x128xf32>
    %215 = vector.shape_cast %211 : vector<8x128xf32> to vector<1x8x128xf32>
    tpu.vector_store %arg4[%212, %c0_52, %c0_53], %215 {strides = array<i32>} : memref<8x8x128xf32, #tpu.memory_space<vmem>>, vector<1x8x128xf32>,
    %c6_i32 = arith.constant 6 : i32
    %216 = arith.index_cast %c6_i32 : i32 to index
    %c0_54 = arith.constant 0 : index
    %c0_55 = arith.constant 0 : index
    %217 = vector.load %arg2[%216, %c0_54, %c0_55] : memref<8x8x512xf32, #tpu.memory_space<vmem>>, vector<1x8x512xf32>
    %218 = vector.shape_cast %217 : vector<1x8x512xf32> to vector<8x512xf32>
    %219 = arith.truncf %211 : vector<8x128xf32> to vector<8x128xbf16>
    %cst_56 = arith.constant dense<0.000000e+00> : vector<8x512xf32>
    %220 = tpu.matmul %219, %3, %cst_56 {dimension_numbers = #tpu.dot_dimension_numbers<[1], [0], [0], [1], [0, 0, 1, 1], [], []>} : vector<8x128xbf16>, vector<128x512xbf16>, vector<8x512xf32> -> vector<8x512xf32>
    %221 = arith.addf %218, %220 : vector<8x512xf32>
    %222 = vector.extract_strided_slice %221 {offsets = [0, 0], sizes = [8, 128], strides = [1, 1]} : vector<8x512xf32> to vector<8x128xf32>
    %223 = arith.negf %222 : vector<8x128xf32>
    %224 = math.exp %223 : vector<8x128xf32>
    %cst_57 = arith.constant 1.000000e+00 : f32
    %225 = vector.broadcast %cst_57 : f32 to vector<8x128xf32>
    %226 = arith.addf %225, %224 : vector<8x128xf32>
    %227 = arith.divf %225, %226 : vector<8x128xf32>
    %228 = vector.extract_strided_slice %221 {offsets = [0, 128], sizes = [8, 128], strides = [1, 1]} : vector<8x512xf32> to vector<8x128xf32>
    %229 = arith.negf %228 : vector<8x128xf32>
    %230 = math.exp %229 : vector<8x128xf32>
    %cst_58 = arith.constant 1.000000e+00 : f32
    %231 = vector.broadcast %cst_58 : f32 to vector<8x128xf32>
    %232 = arith.addf %231, %230 : vector<8x128xf32>
    %233 = arith.divf %231, %232 : vector<8x128xf32>
    %234 = vector.extract_strided_slice %221 {offsets = [0, 256], sizes = [8, 128], strides = [1, 1]} : vector<8x512xf32> to vector<8x128xf32>
    %235 = math.tanh %234 : vector<8x128xf32>
    %236 = vector.extract_strided_slice %221 {offsets = [0, 384], sizes = [8, 128], strides = [1, 1]} : vector<8x512xf32> to vector<8x128xf32>
    %237 = arith.negf %236 : vector<8x128xf32>
    %238 = math.exp %237 : vector<8x128xf32>
    %cst_59 = arith.constant 1.000000e+00 : f32
    %239 = vector.broadcast %cst_59 : f32 to vector<8x128xf32>
    %240 = arith.addf %239, %238 : vector<8x128xf32>
    %241 = arith.divf %239, %240 : vector<8x128xf32>
    %242 = arith.mulf %233, %209 : vector<8x128xf32>
    %243 = arith.mulf %227, %235 : vector<8x128xf32>
    %244 = arith.addf %242, %243 : vector<8x128xf32>
    %245 = math.tanh %244 : vector<8x128xf32>
    %246 = arith.mulf %241, %245 : vector<8x128xf32>
    %247 = arith.index_cast %c6_i32 : i32 to index
    %c0_60 = arith.constant 0 : index
    %c0_61 = arith.constant 0 : index
    %248 = vector.load %arg4[%247, %c0_60, %c0_61] : memref<8x8x128xf32, #tpu.memory_space<vmem>>, vector<1x8x128xf32>
    %249 = vector.shape_cast %248 : vector<1x8x128xf32> to vector<8x128xf32>
    %250 = vector.shape_cast %246 : vector<8x128xf32> to vector<1x8x128xf32>
    tpu.vector_store %arg4[%247, %c0_60, %c0_61], %250 {strides = array<i32>} : memref<8x8x128xf32, #tpu.memory_space<vmem>>, vector<1x8x128xf32>,
    %c7_i32 = arith.constant 7 : i32
    %251 = arith.index_cast %c7_i32 : i32 to index
    %c0_62 = arith.constant 0 : index
    %c0_63 = arith.constant 0 : index
    %252 = vector.load %arg2[%251, %c0_62, %c0_63] : memref<8x8x512xf32, #tpu.memory_space<vmem>>, vector<1x8x512xf32>
    %253 = vector.shape_cast %252 : vector<1x8x512xf32> to vector<8x512xf32>
    %254 = arith.truncf %246 : vector<8x128xf32> to vector<8x128xbf16>
    %cst_64 = arith.constant dense<0.000000e+00> : vector<8x512xf32>
    %255 = tpu.matmul %254, %3, %cst_64 {dimension_numbers = #tpu.dot_dimension_numbers<[1], [0], [0], [1], [0, 0, 1, 1], [], []>} : vector<8x128xbf16>, vector<128x512xbf16>, vector<8x512xf32> -> vector<8x512xf32>
    %256 = arith.addf %253, %255 : vector<8x512xf32>
    %257 = vector.extract_strided_slice %256 {offsets = [0, 0], sizes = [8, 128], strides = [1, 1]} : vector<8x512xf32> to vector<8x128xf32>
    %258 = arith.negf %257 : vector<8x128xf32>
    %259 = math.exp %258 : vector<8x128xf32>
    %cst_65 = arith.constant 1.000000e+00 : f32
    %260 = vector.broadcast %cst_65 : f32 to vector<8x128xf32>
    %261 = arith.addf %260, %259 : vector<8x128xf32>
    %262 = arith.divf %260, %261 : vector<8x128xf32>
    %263 = vector.extract_strided_slice %256 {offsets = [0, 128], sizes = [8, 128], strides = [1, 1]} : vector<8x512xf32> to vector<8x128xf32>
    %264 = arith.negf %263 : vector<8x128xf32>
    %265 = math.exp %264 : vector<8x128xf32>
    %cst_66 = arith.constant 1.000000e+00 : f32
    %266 = vector.broadcast %cst_66 : f32 to vector<8x128xf32>
    %267 = arith.addf %266, %265 : vector<8x128xf32>
    %268 = arith.divf %266, %267 : vector<8x128xf32>
    %269 = vector.extract_strided_slice %256 {offsets = [0, 256], sizes = [8, 128], strides = [1, 1]} : vector<8x512xf32> to vector<8x128xf32>
    %270 = math.tanh %269 : vector<8x128xf32>
    %271 = vector.extract_strided_slice %256 {offsets = [0, 384], sizes = [8, 128], strides = [1, 1]} : vector<8x512xf32> to vector<8x128xf32>
    %272 = arith.negf %271 : vector<8x128xf32>
    %273 = math.exp %272 : vector<8x128xf32>
    %cst_67 = arith.constant 1.000000e+00 : f32
    %274 = vector.broadcast %cst_67 : f32 to vector<8x128xf32>
    %275 = arith.addf %274, %273 : vector<8x128xf32>
    %276 = arith.divf %274, %275 : vector<8x128xf32>
    %277 = arith.mulf %268, %244 : vector<8x128xf32>
    %278 = arith.mulf %262, %270 : vector<8x128xf32>
    %279 = arith.addf %277, %278 : vector<8x128xf32>
    %280 = math.tanh %279 : vector<8x128xf32>
    %281 = arith.mulf %276, %280 : vector<8x128xf32>
    %282 = arith.index_cast %c7_i32 : i32 to index
    %c0_68 = arith.constant 0 : index
    %c0_69 = arith.constant 0 : index
    %283 = vector.load %arg4[%282, %c0_68, %c0_69] : memref<8x8x128xf32, #tpu.memory_space<vmem>>, vector<1x8x128xf32>
    %284 = vector.shape_cast %283 : vector<1x8x128xf32> to vector<8x128xf32>
    %285 = vector.shape_cast %281 : vector<8x128xf32> to vector<1x8x128xf32>
    tpu.vector_store %arg4[%282, %c0_68, %c0_69], %285 {strides = array<i32>} : memref<8x8x128xf32, #tpu.memory_space<vmem>>, vector<1x8x128xf32>,
    %c8_i32 = arith.constant 8 : i32
    %c0_70 = arith.constant 0 : index
    %c0_71 = arith.constant 0 : index
    %286 = vector.load %arg7[%c0_70, %c0_71] : memref<8x128xf32, #tpu.memory_space<vmem>>, vector<8x128xf32>
    tpu.vector_store %arg7[%c0_70, %c0_71], %281 {strides = array<i32>} : memref<8x128xf32, #tpu.memory_space<vmem>>, vector<8x128xf32>,
    %c0_72 = arith.constant 0 : index
    %c0_73 = arith.constant 0 : index
    %287 = vector.load %arg8[%c0_72, %c0_73] : memref<8x128xf32, #tpu.memory_space<vmem>>, vector<8x128xf32>
    tpu.vector_store %arg8[%c0_72, %c0_73], %279 {strides = array<i32>} : memref<8x128xf32, #tpu.memory_space<vmem>>, vector<8x128xf32>,
    %c0_i32_74 = arith.constant 0 : i32
    %288 = arith.cmpi eq, %arg1, %c0_i32_74 : i32
    %289 = arith.extui %288 : i1 to i32
    %c0_i32_75 = arith.constant 0 : i32
    %290 = arith.cmpi ne, %289, %c0_i32_75 : i32
    scf.if %290 {
      %c0_76 = arith.constant 0 : index
      %c0_77 = arith.constant 0 : index
      %291 = vector.load %arg5[%c0_76, %c0_77] : memref<8x128xf32, #tpu.memory_space<vmem>>, vector<8x128xf32>
      tpu.vector_store %arg5[%c0_76, %c0_77], %281 {strides = array<i32>} : memref<8x128xf32, #tpu.memory_space<vmem>>, vector<8x128xf32>,
      %c0_78 = arith.constant 0 : index
      %c0_79 = arith.constant 0 : index
      %292 = vector.load %arg6[%c0_78, %c0_79] : memref<8x128xf32, #tpu.memory_space<vmem>>, vector<8x128xf32>
      tpu.vector_store %arg6[%c0_78, %c0_79], %279 {strides = array<i32>} : memref<8x128xf32, #tpu.memory_space<vmem>>, vector<8x128xf32>,
    } else {
    }
    return
  }
  func.func @transform_0(%arg0: i32, %arg1: i32) -> (i32, i32, i32) {
    %c0_i32 = arith.constant 0 : i32
    %c0_i32_0 = arith.constant 0 : i32
    return %arg1, %arg0, %c0_i32 : i32, i32, i32
  }
  func.func @transform_1(%arg0: i32, %arg1: i32) -> (i32, i32) {
    %c0_i32 = arith.constant 0 : i32
    %c0_i32_0 = arith.constant 0 : i32
    %c0_i32_1 = arith.constant 0 : i32
    return %c0_i32, %c0_i32_0 : i32, i32
  }
  func.func @transform_2(%arg0: i32, %arg1: i32) -> (i32, i32, i32) {
    %c0_i32 = arith.constant 0 : i32
    %c0_i32_0 = arith.constant 0 : i32
    return %arg1, %arg0, %c0_i32 : i32, i32, i32
  }
  func.func @transform_3(%arg0: i32, %arg1: i32) -> (i32, i32) {
    %c0_i32 = arith.constant 0 : i32
    %c0_i32_0 = arith.constant 0 : i32
    return %arg0, %c0_i32 : i32, i32
  }
  func.func @transform_4(%arg0: i32, %arg1: i32) -> (i32, i32) {
    %c0_i32 = arith.constant 0 : i32
    %c0_i32_0 = arith.constant 0 : i32
    return %arg0, %c0_i32 : i32, i32
  }
}

</mosaic_0001>

<llo_original>
// kernel: tpu_custom_call.1
$region0: #{tpu_custom_call.1}
  #allocation0 [shape = 'u32[]', space=smem, size = 0x4, offset = 0x4, fixed_abs, tag = 'smem constant byte address 0x4 - core index']
  #allocation1 [shape = 'u32[144,128]{1,0:T(1,128)}', space=vmem, size = 0x12000, scoped, tag = 'internal scratch']
  #allocation2 [shape = 'f32[8,128]{1,0:T(8,128)}', space=vmem, size = 0x1000, scoped, tag = 'scratch operand']
  #allocation3 [shape = 'f32[8,128]{1,0:T(8,128)}', space=vmem, size = 0x1000, scoped, tag = 'scratch operand']
  %s0 = inlined_call_operand.hbm [shape: f32[8,8,512], index: 0, kind: input, shape index: {}]
  %s1 = inlined_call_operand.hbm [shape: bf16[128,512], index: 1, kind: input, shape index: {}]
  %s2 = inlined_call_operand.hbm [shape: f32[8,8,128], index: 2, kind: output, shape index: {0}]
  %s3 = inlined_call_operand.hbm [shape: f32[8,128], index: 3, kind: output, shape index: {1}]
  %s4 = inlined_call_operand.hbm [shape: f32[8,128], index: 4, kind: output, shape index: {2}]
  %5 = xla_tuple %s2, %s3, %s4
  %s6 = sld [smem:[#allocation0]]
  $region50: #{tpu_custom_call.1} parent=0
    _
  %s8 = ssub.s32 1, %s6
  %s9 = scalar_select 0, %s8, %s6
  $region1: #{tpu_custom_call.1} parent=0
    #allocation4 [shape = 'u8[131072]{0}', space=vmem, size = 0x20000, scoped, tag = 'input window, operand 0, single buffered']
    #allocation5 [shape = 's32[1]{0}', space=sflag, size = 0x4, scoped, tag = 'scoped memory for tpu_custom_call.1']
    #allocation6 [shape = 's32[1]{0}', space=sflag, size = 0x4, scoped, tag = 'scoped memory for tpu_custom_call.1']
    #allocation7 [shape = 'u8[131072]{0}', space=vmem, size = 0x20000, scoped, tag = 'input window, operand 1, single buffered']
    #allocation8 [shape = 's32[1]{0}', space=sflag, size = 0x4, scoped, tag = 'scoped memory for tpu_custom_call.1']
    #allocation9 [shape = 'u8[32768]{0}', space=vmem, size = 0x8000, scoped, tag = 'output window, operand 0, single buffered']
    #allocation10 [shape = 'u8[4096]{0}', space=vmem, size = 0x1000, scoped, tag = 'output window, operand 1, single buffered']
    #allocation11 [shape = 's32[1]{0}', space=sflag, size = 0x4, scoped, tag = 'scoped memory for tpu_custom_call.1']
    #allocation12 [shape = 'u8[4096]{0}', space=vmem, size = 0x1000, scoped, tag = 'output window, operand 2, single buffered']
    %10 = vsyncpa [#allocation5], 0
    %11 = vsyncpa [#allocation8], 0
    %12 = vsyncpa [#allocation6], 0
    %13 = vsyncpa [#allocation11], 0
    // Predicated region
    $region2: #{tpu_custom_call.1} parent=1 // pred_check
      _
    $region3: #{tpu_custom_call.1} parent=1 // pred_check_branch
      %15 = sbr.rel (0) target = $region5
    $region4: #{tpu_custom_call.1} parent=1 // pred_region
      %s17 = ssub.s32 4096, 4096
      %18 = vsyncadd [#allocation5], %s17
      %s19 = sshll.u32 [#allocation4], 4
      %s20 = int_to_ptr.vmem [resolvable:$true] %s19
      %25 = dma.hbm_to_vmem [thread:$0]  %s0, 4096, %s20, [#allocation5], 512, 512, 32
    $region5: #{tpu_custom_call.1} parent=1 // pred_fallthru
      _
    // Predicated region
    $region6: #{tpu_custom_call.1} parent=1 // pred_check
      _
    $region7: #{tpu_custom_call.1} parent=1 // pred_check_branch
      %27 = sbr.rel (0) target = $region9
    $region8: #{tpu_custom_call.1} parent=1 // pred_region
      %s29 = ssub.s32 4096, 4096
      %30 = vsyncadd [#allocation8], %s29
      %s31 = sshll.u32 [#allocation7], 4
      %s32 = int_to_ptr.vmem [resolvable:$true] %s31
      %37 = dma.hbm_to_vmem [thread:$0]  %s1, 4096, %s32, [#allocation8], 256, 256, 16
    $region9: #{tpu_custom_call.1} parent=1 // pred_fallthru
      _
    // Predicated region
    $region10: #{tpu_custom_call.1} parent=1 // pred_check
      _
    $region11: #{tpu_custom_call.1} parent=1 // pred_check_branch
      %39 = sbr.rel (0) target = $region13
    $region12: #{tpu_custom_call.1} parent=1 // pred_region
      %40 = dma.done [#allocation5], 4096
    $region13: #{tpu_custom_call.1} parent=1 // pred_fallthru
      _
    // Predicated region
    $region14: #{tpu_custom_call.1} parent=1 // pred_check
      _
    $region15: #{tpu_custom_call.1} parent=1 // pred_check_branch
      %42 = sbr.rel (0) target = $region17
    $region16: #{tpu_custom_call.1} parent=1 // pred_region
      %43 = dma.done [#allocation8], 4096
    $region17: #{tpu_custom_call.1} parent=1 // pred_fallthru
      _
    %p45 = scmp.eq.s32.totalorder 0, 0
    // Predicated region
    $region18: #{tpu_custom_call.1} parent=1 // pred_check
      %p46 = pneg %p45
    $region19: #{tpu_custom_call.1} parent=1 // pred_check_branch
      %48 = sbr.rel (%p46) target = $region21
    $region20: #{tpu_custom_call.1} parent=1 // pred_region
      %49 = vst [vmem:[#allocation2] sm:$0xff] 0.0
      %50 = vst [vmem:[#allocation3] sm:$0xff] 0.0
    $region21: #{tpu_custom_call.1} parent=1 // pred_fallthru
      _
    %v51 = vld [vmem:[#allocation7] sm:$0xff]
    %v52 = vld [vmem:[#allocation7 + $0x8] sm:$0xff]
    %v53 = vld [vmem:[#allocation7 + $0x10] sm:$0xff]
    %v54 = vld [vmem:[#allocation7 + $0x18] sm:$0xff]
    %v55 = vld [vmem:[#allocation7 + $0x20] sm:$0xff]
    %v56 = vld [vmem:[#allocation7 + $0x28] sm:$0xff]
    %v57 = vld [vmem:[#allocation7 + $0x30] sm:$0xff]
    %v58 = vld [vmem:[#allocation7 + $0x38] sm:$0xff]
    %v59 = vld [vmem:[#allocation7 + $0x40] sm:$0xff]
    %v60 = vld [vmem:[#allocation7 + $0x48] sm:$0xff]
    %v61 = vld [vmem:[#allocation7 + $0x50] sm:$0xff]
    %v62 = vld [vmem:[#allocation7 + $0x58] sm:$0xff]
    %v63 = vld [vmem:[#allocation7 + $0x60] sm:$0xff]
    %v64 = vld [vmem:[#allocation7 + $0x68] sm:$0xff]
    %v65 = vld [vmem:[#allocation7 + $0x70] sm:$0xff]
    %v66 = vld [vmem:[#allocation7 + $0x78] sm:$0xff]
    %v67 = vld [vmem:[#allocation7 + $0x80] sm:$0xff]
    %v68 = vld [vmem:[#allocation7 + $0x88] sm:$0xff]
    %v69 = vld [vmem:[#allocation7 + $0x90] sm:$0xff]
    %v70 = vld [vmem:[#allocation7 + $0x98] sm:$0xff]
    %v71 = vld [vmem:[#allocation7 + $0xa0] sm:$0xff]
    %v72 = vld [vmem:[#allocation7 + $0xa8] sm:$0xff]
    %v73 = vld [vmem:[#allocation7 + $0xb0] sm:$0xff]
    %v74 = vld [vmem:[#allocation7 + $0xb8] sm:$0xff]
    %v75 = vld [vmem:[#allocation7 + $0xc0] sm:$0xff]
    %v76 = vld [vmem:[#allocation7 + $0xc8] sm:$0xff]
    %v77 = vld [vmem:[#allocation7 + $0xd0] sm:$0xff]
    %v78 = vld [vmem:[#allocation7 + $0xd8] sm:$0xff]
    %v79 = vld [vmem:[#allocation7 + $0xe0] sm:$0xff]
    %v80 = vld [vmem:[#allocation7 + $0xe8] sm:$0xff]
    %v81 = vld [vmem:[#allocation7 + $0xf0] sm:$0xff]
    %v82 = vld [vmem:[#allocation7 + $0xf8] sm:$0xff]
    %v83 = vld [vmem:[#allocation2] sm:$0xff]
    %v84 = vld [vmem:[#allocation3] sm:$0xff]
    %v85 = vld [vmem:[#allocation4] sm:$0xff]
    %v86 = vld [vmem:[#allocation4 + $0x8] sm:$0xff]
    %v87 = vld [vmem:[#allocation4 + $0x10] sm:$0xff]
    %v88 = vld [vmem:[#allocation4 + $0x18] sm:$0xff]
    %v89 = vpack.c.bf16 %v83, %v83
    %v122 = vunpack.c.l.b16 %v51
    %v123 = vunpack.c.h.b16 %v51
    %v124 = vunpack.c.l.b16 %v52
    %v125 = vunpack.c.h.b16 %v52
    %v126 = vunpack.c.l.b16 %v53
    %v127 = vunpack.c.h.b16 %v53
    %v128 = vunpack.c.l.b16 %v54
    %v129 = vunpack.c.h.b16 %v54
    %v130 = vunpack.c.l.b16 %v55
    %v131 = vunpack.c.h.b16 %v55
    %v132 = vunpack.c.l.b16 %v56
    %v133 = vunpack.c.h.b16 %v56
    %v134 = vunpack.c.l.b16 %v57
    %v135 = vunpack.c.h.b16 %v57
    %v136 = vunpack.c.l.b16 %v58
    %v137 = vunpack.c.h.b16 %v58
    %v138 = vunpack.c.l.b16 %v59
    %v139 = vunpack.c.h.b16 %v59
    %v140 = vunpack.c.l.b16 %v60
    %v141 = vunpack.c.h.b16 %v60
    %v142 = vunpack.c.l.b16 %v61
    %v143 = vunpack.c.h.b16 %v61
    %v144 = vunpack.c.l.b16 %v62
    %v145 = vunpack.c.h.b16 %v62
    %v146 = vunpack.c.l.b16 %v63
    %v147 = vunpack.c.h.b16 %v63
    %v148 = vunpack.c.l.b16 %v64
    %v149 = vunpack.c.h.b16 %v64
    %v150 = vunpack.c.l.b16 %v65
    %v151 = vunpack.c.h.b16 %v65
    %v152 = vunpack.c.l.b16 %v66
    %v153 = vunpack.c.h.b16 %v66
    %v154 = vunpack.c.l.b16 %v67
    %v155 = vunpack.c.h.b16 %v67
    %v156 = vunpack.c.l.b16 %v68
    %v157 = vunpack.c.h.b16 %v68
    %v158 = vunpack.c.l.b16 %v69
    %v159 = vunpack.c.h.b16 %v69
    %v160 = vunpack.c.l.b16 %v70
    %v161 = vunpack.c.h.b16 %v70
    %v162 = vunpack.c.l.b16 %v71
    %v163 = vunpack.c.h.b16 %v71
    %v164 = vunpack.c.l.b16 %v72
    %v165 = vunpack.c.h.b16 %v72
    %v166 = vunpack.c.l.b16 %v73
    %v167 = vunpack.c.h.b16 %v73
    %v168 = vunpack.c.l.b16 %v74
    %v169 = vunpack.c.h.b16 %v74
    %v170 = vunpack.c.l.b16 %v75
    %v171 = vunpack.c.h.b16 %v75
    %v172 = vunpack.c.l.b16 %v76
    %v173 = vunpack.c.h.b16 %v76
    %v174 = vunpack.c.l.b16 %v77
    %v175 = vunpack.c.h.b16 %v77
    %v176 = vunpack.c.l.b16 %v78
    %v177 = vunpack.c.h.b16 %v78
    %v178 = vunpack.c.l.b16 %v79
    %v179 = vunpack.c.h.b16 %v79
    %v180 = vunpack.c.l.b16 %v80
    %v181 = vunpack.c.h.b16 %v80
    %v182 = vunpack.c.l.b16 %v81
    %v183 = vunpack.c.h.b16 %v81
    %v184 = vunpack.c.l.b16 %v82
    %v185 = vunpack.c.h.b16 %v82
    %v186 = vpack.c.b16 %v126, %v122
    %v187 = vpack.c.b16 %v127, %v123
    %v188 = vpack.c.b16 %v128, %v124
    %v189 = vpack.c.b16 %v129, %v125
    %v190 = vpack.c.b16 %v134, %v130
    %v191 = vpack.c.b16 %v135, %v131
    %v192 = vpack.c.b16 %v136, %v132
    %v193 = vpack.c.b16 %v137, %v133
    %v194 = vpack.c.b16 %v142, %v138
    %v195 = vpack.c.b16 %v143, %v139
    %v196 = vpack.c.b16 %v144, %v140
    %v197 = vpack.c.b16 %v145, %v141
    %v198 = vpack.c.b16 %v150, %v146
    %v199 = vpack.c.b16 %v151, %v147
    %v200 = vpack.c.b16 %v152, %v148
    %v201 = vpack.c.b16 %v153, %v149
    %v202 = vpack.c.b16 %v158, %v154
    %v203 = vpack.c.b16 %v159, %v155
    %v204 = vpack.c.b16 %v160, %v156
    %v205 = vpack.c.b16 %v161, %v157
    %v206 = vpack.c.b16 %v166, %v162
    %v207 = vpack.c.b16 %v167, %v163
    %v208 = vpack.c.b16 %v168, %v164
    %v209 = vpack.c.b16 %v169, %v165
    %v210 = vpack.c.b16 %v174, %v170
    %v211 = vpack.c.b16 %v175, %v171
    %v212 = vpack.c.b16 %v176, %v172
    %v213 = vpack.c.b16 %v177, %v173
    %v214 = vpack.c.b16 %v182, %v178
    %v215 = vpack.c.b16 %v183, %v179
    %v216 = vpack.c.b16 %v184, %v180
    %v217 = vpack.c.b16 %v185, %v181
    %250 = vmatprep.subr.bf16.mxu0 %v215
    %251 = vmatpush1.bf16.msra.mxu0 %v214
    %252 = vmatprep.subr.bf16.mxu0 %v211
    %253 = vmatpush1.bf16.msra.mxu0 %v210
    %254 = vmatprep.subr.bf16.mxu0 %v207
    %255 = vmatpush1.bf16.msra.mxu0 %v206
    %256 = vmatprep.subr.bf16.mxu0 %v203
    %257 = vmatpush1.bf16.msra.mxu0 %v202
    %258 = vmatprep.subr.bf16.mxu0 %v199
    %259 = vmatpush1.bf16.msra.mxu0 %v198
    %260 = vmatprep.subr.bf16.mxu0 %v195
    %261 = vmatpush1.bf16.msra.mxu0 %v194
    %262 = vmatprep.subr.bf16.mxu0 %v191
    %263 = vmatpush1.bf16.msra.mxu0 %v190
    %264 = vmatprep.subr.bf16.mxu0 %v187
    %265 = vmatpush1.bf16.msra.mxu0 %v186
    %266 = vmatprep.subr.bf16.mxu0 0
    %267 = vmatpush2.bf16.msra.mxu0 0
    %268 = vmatprep.subr.bf16.mxu0 0
    %269 = vmatpush2.bf16.msra.mxu0 0
    %270 = vmatprep.subr.bf16.mxu0 0
    %271 = vmatpush2.bf16.msra.mxu0 0
    %272 = vmatprep.subr.bf16.mxu0 0
    %273 = vmatpush2.bf16.msra.mxu0 0
    %274 = vmatprep.subr.bf16.mxu0 0
    %275 = vmatpush2.bf16.msra.mxu0 0
    %276 = vmatprep.subr.bf16.mxu0 0
    %277 = vmatpush2.bf16.msra.mxu0 0
    %278 = vmatprep.subr.bf16.mxu0 0
    %279 = vmatpush2.bf16.msra.mxu0 0
    %280 = vmatprep.subr.bf16.mxu0 0
    %281 = vmatpush2.bf16.msra.mxu0 0
    %282 = vmatprep.mubr.bf16.mxu0 0
    %283 = vmatmul.mubr.bf16.gmra.mxu0 %v89
    %v284 = vpop.f32.mrf.mxu0
    %v285 = vadd.f32 0.0, %v284
    %v286 = vpop.f32.mrf.mxu0
    %v287 = vadd.f32 0.0, %v286
    %v288 = vpop.f32.mrf.mxu0
    %v289 = vpop.f32.mrf.mxu0
    %290 = vdwg.mxu0
    %291 = vmatprep.subr.bf16.mxu0 %v217
    %292 = vmatpush1.bf16.msra.mxu0 %v216
    %293 = vmatprep.subr.bf16.mxu0 %v213
    %294 = vmatpush1.bf16.msra.mxu0 %v212
    %295 = vmatprep.subr.bf16.mxu0 %v209
    %296 = vmatpush1.bf16.msra.mxu0 %v208
    %297 = vmatprep.subr.bf16.mxu0 %v205
    %298 = vmatpush1.bf16.msra.mxu0 %v204
    %299 = vmatprep.subr.bf16.mxu0 %v201
    %300 = vmatpush1.bf16.msra.mxu0 %v200
    %301 = vmatprep.subr.bf16.mxu0 %v197
    %302 = vmatpush1.bf16.msra.mxu0 %v196
    %303 = vmatprep.subr.bf16.mxu0 %v193
    %304 = vmatpush1.bf16.msra.mxu0 %v192
    %305 = vmatprep.subr.bf16.mxu0 %v189
    %306 = vmatpush1.bf16.msra.mxu0 %v188
    %307 = vmatprep.subr.bf16.mxu0 0
    %308 = vmatpush2.bf16.msra.mxu0 0
    %309 = vmatprep.subr.bf16.mxu0 0
    %310 = vmatpush2.bf16.msra.mxu0 0
    %311 = vmatprep.subr.bf16.mxu0 0
    %312 = vmatpush2.bf16.msra.mxu0 0
    %313 = vmatprep.subr.bf16.mxu0 0
    %314 = vmatpush2.bf16.msra.mxu0 0
    %315 = vmatprep.subr.bf16.mxu0 0
    %316 = vmatpush2.bf16.msra.mxu0 0
    %317 = vmatprep.subr.bf16.mxu0 0
    %318 = vmatpush2.bf16.msra.mxu0 0
    %319 = vmatprep.subr.bf16.mxu0 0
    %320 = vmatpush2.bf16.msra.mxu0 0
    %321 = vmatprep.subr.bf16.mxu0 0
    %322 = vmatpush2.bf16.msra.mxu0 0
    %323 = vmatprep.mubr.bf16.mxu0 0
    %324 = vmatmul.mubr.bf16.gmra.mxu0 %v89
    %v325 = vpop.f32.mrf.mxu0
    %v326 = vadd.f32 0.0, %v325
    %v327 = vpop.f32.mrf.mxu0
    %v328 = vadd.f32 0.0, %v327
    %v329 = vpop.f32.mrf.mxu0
    %v330 = vpop.f32.mrf.mxu0
    %331 = vdwg.mxu0
    %v332 = vadd.f32 %v85, %v285
    %v333 = vadd.f32 %v86, %v287
    %v334 = vadd.f32 %v87, %v326
    %v335 = vadd.f32 %v88, %v328
    %v336 = vxor.u32 %v332, 2147483648
    %v337 = vmul.f32 %v336, 1.442695
    %v338 = vpow.pop %v337
    %v339 = vadd.f32 %v338, 1.0
    %v340 = vrcp.pop %v339
    %v341 = vmul.f32 1.0, %v340
    %v342 = vxor.u32 %v333, 2147483648
    %v343 = vmul.f32 %v342, 1.442695
    %v344 = vpow.pop %v343
    %v345 = vadd.f32 %v344, 1.0
    %v346 = vrcp.pop %v345
    %v347 = vmul.f32 1.0, %v346
    %v348 = vtanh.pop %v334
    %v349 = vxor.u32 %v335, 2147483648
    %v350 = vmul.f32 %v349, 1.442695
    %v351 = vpow.pop %v350
    %v352 = vadd.f32 %v351, 1.0
    %v353 = vrcp.pop %v352
    %v354 = vmul.f32 1.0, %v353
    %v355 = vmul.f32 %v347, %v84
    %v356 = vmul.f32 %v341, %v348
    %v357 = vadd.f32 %v355, %v356
    %v358 = vtanh.pop %v357
    %v359 = vmul.f32 %v354, %v358
    %360 = vst [vmem:[#allocation9] sm:$0xff] %v359
    %s361 = scalar_lea.vmem [#allocation4], 32
    %v362 = vld [vmem:[%s361] sm:$0xff]
    %v363 = vld [vmem:[%s361 + $0x8] sm:$0xff]
    %v364 = vld [vmem:[%s361 + $0x10] sm:$0xff]
    %v365 = vld [vmem:[%s361 + $0x18] sm:$0xff]
    %v366 = vpack.c.bf16 %v359, %v359
    %367 = vmatprep.subr.bf16.mxu0 %v215
    %368 = vmatpush1.bf16.msra.mxu0 %v214
    %369 = vmatprep.subr.bf16.mxu0 %v211
    %370 = vmatpush1.bf16.msra.mxu0 %v210
    %371 = vmatprep.subr.bf16.mxu0 %v207
    %372 = vmatpush1.bf16.msra.mxu0 %v206
    %373 = vmatprep.subr.bf16.mxu0 %v203
    %374 = vmatpush1.bf16.msra.mxu0 %v202
    %375 = vmatprep.subr.bf16.mxu0 %v199
    %376 = vmatpush1.bf16.msra.mxu0 %v198
    %377 = vmatprep.subr.bf16.mxu0 %v195
    %378 = vmatpush1.bf16.msra.mxu0 %v194
    %379 = vmatprep.subr.bf16.mxu0 %v191
    %380 = vmatpush1.bf16.msra.mxu0 %v190
    %381 = vmatprep.subr.bf16.mxu0 %v187
    %382 = vmatpush1.bf16.msra.mxu0 %v186
    %383 = vmatprep.subr.bf16.mxu0 0
    %384 = vmatpush2.bf16.msra.mxu0 0
    %385 = vmatprep.subr.bf16.mxu0 0
    %386 = vmatpush2.bf16.msra.mxu0 0
    %387 = vmatprep.subr.bf16.mxu0 0
    %388 = vmatpush2.bf16.msra.mxu0 0
    %389 = vmatprep.subr.bf16.mxu0 0
    %390 = vmatpush2.bf16.msra.mxu0 0
    %391 = vmatprep.subr.bf16.mxu0 0
    %392 = vmatpush2.bf16.msra.mxu0 0
    %393 = vmatprep.subr.bf16.mxu0 0
    %394 = vmatpush2.bf16.msra.mxu0 0
    %395 = vmatprep.subr.bf16.mxu0 0
    %396 = vmatpush2.bf16.msra.mxu0 0
    %397 = vmatprep.subr.bf16.mxu0 0
    %398 = vmatpush2.bf16.msra.mxu0 0
    %399 = vmatprep.mubr.bf16.mxu0 0
    %400 = vmatmul.mubr.bf16.gmra.mxu0 %v366
    %v401 = vpop.f32.mrf.mxu0
    %v402 = vadd.f32 0.0, %v401
    %v403 = vpop.f32.mrf.mxu0
    %v404 = vadd.f32 0.0, %v403
    %v405 = vpop.f32.mrf.mxu0
    %v406 = vpop.f32.mrf.mxu0
    %407 = vdwg.mxu0
    %408 = vmatprep.subr.bf16.mxu0 %v217
    %409 = vmatpush1.bf16.msra.mxu0 %v216
    %410 = vmatprep.subr.bf16.mxu0 %v213
    %411 = vmatpush1.bf16.msra.mxu0 %v212
    %412 = vmatprep.subr.bf16.mxu0 %v209
    %413 = vmatpush1.bf16.msra.mxu0 %v208
    %414 = vmatprep.subr.bf16.mxu0 %v205
    %415 = vmatpush1.bf16.msra.mxu0 %v204
    %416 = vmatprep.subr.bf16.mxu0 %v201
    %417 = vmatpush1.bf16.msra.mxu0 %v200
    %418 = vmatprep.subr.bf16.mxu0 %v197
    %419 = vmatpush1.bf16.msra.mxu0 %v196
    %420 = vmatprep.subr.bf16.mxu0 %v193
    %421 = vmatpush1.bf16.msra.mxu0 %v192
    %422 = vmatprep.subr.bf16.mxu0 %v189
    %423 = vmatpush1.bf16.msra.mxu0 %v188
    %424 = vmatprep.subr.bf16.mxu0 0
    %425 = vmatpush2.bf16.msra.mxu0 0
    %426 = vmatprep.subr.bf16.mxu0 0
    %427 = vmatpush2.bf16.msra.mxu0 0
    %428 = vmatprep.subr.bf16.mxu0 0
    %429 = vmatpush2.bf16.msra.mxu0 0
    %430 = vmatprep.subr.bf16.mxu0 0
    %431 = vmatpush2.bf16.msra.mxu0 0
    %432 = vmatprep.subr.bf16.mxu0 0
    %433 = vmatpush2.bf16.msra.mxu0 0
    %434 = vmatprep.subr.bf16.mxu0 0
    %435 = vmatpush2.bf16.msra.mxu0 0
    %436 = vmatprep.subr.bf16.mxu0 0
    %437 = vmatpush2.bf16.msra.mxu0 0
    %438 = vmatprep.subr.bf16.mxu0 0
    %439 = vmatpush2.bf16.msra.mxu0 0
    %440 = vmatprep.mubr.bf16.mxu0 0
    %441 = vmatmul.mubr.bf16.gmra.mxu0 %v366
    %v442 = vpop.f32.mrf.mxu0
    %v443 = vadd.f32 0.0, %v442
    %v444 = vpop.f32.mrf.mxu0
    %v445 = vadd.f32 0.0, %v444
    %v446 = vpop.f32.mrf.mxu0
    %v447 = vpop.f32.mrf.mxu0
    %448 = vdwg.mxu0
    %v449 = vadd.f32 %v362, %v402
    %v450 = vadd.f32 %v363, %v404
    %v451 = vadd.f32 %v364, %v443
    %v452 = vadd.f32 %v365, %v445
    %v453 = vxor.u32 %v449, 2147483648
    %v454 = vmul.f32 %v453, 1.442695
    %v455 = vpow.pop %v454
    %v456 = vadd.f32 %v455, 1.0
    %v457 = vrcp.pop %v456
    %v458 = vmul.f32 1.0, %v457
    %v459 = vxor.u32 %v450, 2147483648
    %v460 = vmul.f32 %v459, 1.442695
    %v461 = vpow.pop %v460
    %v462 = vadd.f32 %v461, 1.0
    %v463 = vrcp.pop %v462
    %v464 = vmul.f32 1.0, %v463
    %v465 = vtanh.pop %v451
    %v466 = vxor.u32 %v452, 2147483648
    %v467 = vmul.f32 %v466, 1.442695
    %v468 = vpow.pop %v467
    %v469 = vadd.f32 %v468, 1.0
    %v470 = vrcp.pop %v469
    %v471 = vmul.f32 1.0, %v470
    %v472 = vmul.f32 %v464, %v357
    %v473 = vmul.f32 %v458, %v465
    %v474 = vadd.f32 %v472, %v473
    %v475 = vtanh.pop %v474
    %v476 = vmul.f32 %v471, %v475
    %s477 = scalar_lea.vmem [#allocation9], 8
    %478 = vst [vmem:[%s477] sm:$0xff] %v476
    %s479 = scalar_lea.vmem [#allocation4], 64
    %v480 = vld [vmem:[%s479] sm:$0xff]
    %v481 = vld [vmem:[%s479 + $0x8] sm:$0xff]
    %v482 = vld [vmem:[%s479 + $0x10] sm:$0xff]
    %v483 = vld [vmem:[%s479 + $0x18] sm:$0xff]
    %v484 = vpack.c.bf16 %v476, %v476
    %485 = vmatprep.subr.bf16.mxu0 %v215
    %486 = vmatpush1.bf16.msra.mxu0 %v214
    %487 = vmatprep.subr.bf16.mxu0 %v211
    %488 = vmatpush1.bf16.msra.mxu0 %v210
    %489 = vmatprep.subr.bf16.mxu0 %v207
    %490 = vmatpush1.bf16.msra.mxu0 %v206
    %491 = vmatprep.subr.bf16.mxu0 %v203
    %492 = vmatpush1.bf16.msra.mxu0 %v202
    %493 = vmatprep.subr.bf16.mxu0 %v199
    %494 = vmatpush1.bf16.msra.mxu0 %v198
    %495 = vmatprep.subr.bf16.mxu0 %v195
    %496 = vmatpush1.bf16.msra.mxu0 %v194
    %497 = vmatprep.subr.bf16.mxu0 %v191
    %498 = vmatpush1.bf16.msra.mxu0 %v190
    %499 = vmatprep.subr.bf16.mxu0 %v187
    %500 = vmatpush1.bf16.msra.mxu0 %v186
    %501 = vmatprep.subr.bf16.mxu0 0
    %502 = vmatpush2.bf16.msra.mxu0 0
    %503 = vmatprep.subr.bf16.mxu0 0
    %504 = vmatpush2.bf16.msra.mxu0 0
    %505 = vmatprep.subr.bf16.mxu0 0
    %506 = vmatpush2.bf16.msra.mxu0 0
    %507 = vmatprep.subr.bf16.mxu0 0
    %508 = vmatpush2.bf16.msra.mxu0 0
    %509 = vmatprep.subr.bf16.mxu0 0
    %510 = vmatpush2.bf16.msra.mxu0 0
    %511 = vmatprep.subr.bf16.mxu0 0
    %512 = vmatpush2.bf16.msra.mxu0 0
    %513 = vmatprep.subr.bf16.mxu0 0
    %514 = vmatpush2.bf16.msra.mxu0 0
    %515 = vmatprep.subr.bf16.mxu0 0
    %516 = vmatpush2.bf16.msra.mxu0 0
    %517 = vmatprep.mubr.bf16.mxu0 0
    %518 = vmatmul.mubr.bf16.gmra.mxu0 %v484
    %v519 = vpop.f32.mrf.mxu0
    %v520 = vadd.f32 0.0, %v519
    %v521 = vpop.f32.mrf.mxu0
    %v522 = vadd.f32 0.0, %v521
    %v523 = vpop.f32.mrf.mxu0
    %v524 = vpop.f32.mrf.mxu0
    %525 = vdwg.mxu0
    %526 = vmatprep.subr.bf16.mxu0 %v217
    %527 = vmatpush1.bf16.msra.mxu0 %v216
    %528 = vmatprep.subr.bf16.mxu0 %v213
    %529 = vmatpush1.bf16.msra.mxu0 %v212
    %530 = vmatprep.subr.bf16.mxu0 %v209
    %531 = vmatpush1.bf16.msra.mxu0 %v208
    %532 = vmatprep.subr.bf16.mxu0 %v205
    %533 = vmatpush1.bf16.msra.mxu0 %v204
    %534 = vmatprep.subr.bf16.mxu0 %v201
    %535 = vmatpush1.bf16.msra.mxu0 %v200
    %536 = vmatprep.subr.bf16.mxu0 %v197
    %537 = vmatpush1.bf16.msra.mxu0 %v196
    %538 = vmatprep.subr.bf16.mxu0 %v193
    %539 = vmatpush1.bf16.msra.mxu0 %v192
    %540 = vmatprep.subr.bf16.mxu0 %v189
    %541 = vmatpush1.bf16.msra.mxu0 %v188
    %542 = vmatprep.subr.bf16.mxu0 0
    %543 = vmatpush2.bf16.msra.mxu0 0
    %544 = vmatprep.subr.bf16.mxu0 0
    %545 = vmatpush2.bf16.msra.mxu0 0
    %546 = vmatprep.subr.bf16.mxu0 0
    %547 = vmatpush2.bf16.msra.mxu0 0
    %548 = vmatprep.subr.bf16.mxu0 0
    %549 = vmatpush2.bf16.msra.mxu0 0
    %550 = vmatprep.subr.bf16.mxu0 0
    %551 = vmatpush2.bf16.msra.mxu0 0
    %552 = vmatprep.subr.bf16.mxu0 0
    %553 = vmatpush2.bf16.msra.mxu0 0
    %554 = vmatprep.subr.bf16.mxu0 0
    %555 = vmatpush2.bf16.msra.mxu0 0
    %556 = vmatprep.subr.bf16.mxu0 0
    %557 = vmatpush2.bf16.msra.mxu0 0
    %558 = vmatprep.mubr.bf16.mxu0 0
    %559 = vmatmul.mubr.bf16.gmra.mxu0 %v484
    %v560 = vpop.f32.mrf.mxu0
    %v561 = vadd.f32 0.0, %v560
    %v562 = vpop.f32.mrf.mxu0
    %v563 = vadd.f32 0.0, %v562
    %v564 = vpop.f32.mrf.mxu0
    %v565 = vpop.f32.mrf.mxu0
    %566 = vdwg.mxu0
    %v567 = vadd.f32 %v480, %v520
    %v568 = vadd.f32 %v481, %v522
    %v569 = vadd.f32 %v482, %v561
    %v570 = vadd.f32 %v483, %v563
    %v571 = vxor.u32 %v567, 2147483648
    %v572 = vmul.f32 %v571, 1.442695
    %v573 = vpow.pop %v572
    %v574 = vadd.f32 %v573, 1.0
    %v575 = vrcp.pop %v574
    %v576 = vmul.f32 1.0, %v575
    %v577 = vxor.u32 %v568, 2147483648
    %v578 = vmul.f32 %v577, 1.442695
    %v579 = vpow.pop %v578
    %v580 = vadd.f32 %v579, 1.0
    %v581 = vrcp.pop %v580
    %v582 = vmul.f32 1.0, %v581
    %v583 = vtanh.pop %v569
    %v584 = vxor.u32 %v570, 2147483648
    %v585 = vmul.f32 %v584, 1.442695
    %v586 = vpow.pop %v585
    %v587 = vadd.f32 %v586, 1.0
    %v588 = vrcp.pop %v587
    %v589 = vmul.f32 1.0, %v588
    %v590 = vmul.f32 %v582, %v474
    %v591 = vmul.f32 %v576, %v583
    %v592 = vadd.f32 %v590, %v591
    %v593 = vtanh.pop %v592
    %v594 = vmul.f32 %v589, %v593
    %s595 = scalar_lea.vmem [#allocation9], 16
    %596 = vst [vmem:[%s595] sm:$0xff] %v594
    %s597 = scalar_lea.vmem [#allocation4], 96
    %v598 = vld [vmem:[%s597] sm:$0xff]
    %v599 = vld [vmem:[%s597 + $0x8] sm:$0xff]
    %v600 = vld [vmem:[%s597 + $0x10] sm:$0xff]
    %v601 = vld [vmem:[%s597 + $0x18] sm:$0xff]
    %v602 = vpack.c.bf16 %v594, %v594
    %603 = vmatprep.subr.bf16.mxu0 %v215
    %604 = vmatpush1.bf16.msra.mxu0 %v214
    %605 = vmatprep.subr.bf16.mxu0 %v211
    %606 = vmatpush1.bf16.msra.mxu0 %v210
    %607 = vmatprep.subr.bf16.mxu0 %v207
    %608 = vmatpush1.bf16.msra.mxu0 %v206
    %609 = vmatprep.subr.bf16.mxu0 %v203
    %610 = vmatpush1.bf16.msra.mxu0 %v202
    %611 = vmatprep.subr.bf16.mxu0 %v199
    %612 = vmatpush1.bf16.msra.mxu0 %v198
    %613 = vmatprep.subr.bf16.mxu0 %v195
    %614 = vmatpush1.bf16.msra.mxu0 %v194
    %615 = vmatprep.subr.bf16.mxu0 %v191
    %616 = vmatpush1.bf16.msra.mxu0 %v190
    %617 = vmatprep.subr.bf16.mxu0 %v187
    %618 = vmatpush1.bf16.msra.mxu0 %v186
    %619 = vmatprep.subr.bf16.mxu0 0
    %620 = vmatpush2.bf16.msra.mxu0 0
    %621 = vmatprep.subr.bf16.mxu0 0
    %622 = vmatpush2.bf16.msra.mxu0 0
    %623 = vmatprep.subr.bf16.mxu0 0
    %624 = vmatpush2.bf16.msra.mxu0 0
    %625 = vmatprep.subr.bf16.mxu0 0
    %626 = vmatpush2.bf16.msra.mxu0 0
    %627 = vmatprep.subr.bf16.mxu0 0
    %628 = vmatpush2.bf16.msra.mxu0 0
    %629 = vmatprep.subr.bf16.mxu0 0
    %630 = vmatpush2.bf16.msra.mxu0 0
    %631 = vmatprep.subr.bf16.mxu0 0
    %632 = vmatpush2.bf16.msra.mxu0 0
    %633 = vmatprep.subr.bf16.mxu0 0
    %634 = vmatpush2.bf16.msra.mxu0 0
    %635 = vmatprep.mubr.bf16.mxu0 0
    %636 = vmatmul.mubr.bf16.gmra.mxu0 %v602
    %v637 = vpop.f32.mrf.mxu0
    %v638 = vadd.f32 0.0, %v637
    %v639 = vpop.f32.mrf.mxu0
    %v640 = vadd.f32 0.0, %v639
    %v641 = vpop.f32.mrf.mxu0
    %v642 = vpop.f32.mrf.mxu0
    %643 = vdwg.mxu0
    %644 = vmatprep.subr.bf16.mxu0 %v217
    %645 = vmatpush1.bf16.msra.mxu0 %v216
    %646 = vmatprep.subr.bf16.mxu0 %v213
    %647 = vmatpush1.bf16.msra.mxu0 %v212
    %648 = vmatprep.subr.bf16.mxu0 %v209
    %649 = vmatpush1.bf16.msra.mxu0 %v208
    %650 = vmatprep.subr.bf16.mxu0 %v205
    %651 = vmatpush1.bf16.msra.mxu0 %v204
    %652 = vmatprep.subr.bf16.mxu0 %v201
    %653 = vmatpush1.bf16.msra.mxu0 %v200
    %654 = vmatprep.subr.bf16.mxu0 %v197
    %655 = vmatpush1.bf16.msra.mxu0 %v196
    %656 = vmatprep.subr.bf16.mxu0 %v193
    %657 = vmatpush1.bf16.msra.mxu0 %v192
    %658 = vmatprep.subr.bf16.mxu0 %v189
    %659 = vmatpush1.bf16.msra.mxu0 %v188
    %660 = vmatprep.subr.bf16.mxu0 0
    %661 = vmatpush2.bf16.msra.mxu0 0
    %662 = vmatprep.subr.bf16.mxu0 0
    %663 = vmatpush2.bf16.msra.mxu0 0
    %664 = vmatprep.subr.bf16.mxu0 0
    %665 = vmatpush2.bf16.msra.mxu0 0
    %666 = vmatprep.subr.bf16.mxu0 0
    %667 = vmatpush2.bf16.msra.mxu0 0
    %668 = vmatprep.subr.bf16.mxu0 0
    %669 = vmatpush2.bf16.msra.mxu0 0
    %670 = vmatprep.subr.bf16.mxu0 0
    %671 = vmatpush2.bf16.msra.mxu0 0
    %672 = vmatprep.subr.bf16.mxu0 0
    %673 = vmatpush2.bf16.msra.mxu0 0
    %674 = vmatprep.subr.bf16.mxu0 0
    %675 = vmatpush2.bf16.msra.mxu0 0
    %676 = vmatprep.mubr.bf16.mxu0 0
    %677 = vmatmul.mubr.bf16.gmra.mxu0 %v602
    %v678 = vpop.f32.mrf.mxu0
    %v679 = vadd.f32 0.0, %v678
    %v680 = vpop.f32.mrf.mxu0
    %v681 = vadd.f32 0.0, %v680
    %v682 = vpop.f32.mrf.mxu0
    %v683 = vpop.f32.mrf.mxu0
    %684 = vdwg.mxu0
    %v685 = vadd.f32 %v598, %v638
    %v686 = vadd.f32 %v599, %v640
    %v687 = vadd.f32 %v600, %v679
    %v688 = vadd.f32 %v601, %v681
    %v689 = vxor.u32 %v685, 2147483648
    %v690 = vmul.f32 %v689, 1.442695
    %v691 = vpow.pop %v690
    %v692 = vadd.f32 %v691, 1.0
    %v693 = vrcp.pop %v692
    %v694 = vmul.f32 1.0, %v693
    %v695 = vxor.u32 %v686, 2147483648
    %v696 = vmul.f32 %v695, 1.442695
    %v697 = vpow.pop %v696
    %v698 = vadd.f32 %v697, 1.0
    %v699 = vrcp.pop %v698
    %v700 = vmul.f32 1.0, %v699
    %v701 = vtanh.pop %v687
    %v702 = vxor.u32 %v688, 2147483648
    %v703 = vmul.f32 %v702, 1.442695
    %v704 = vpow.pop %v703
    %v705 = vadd.f32 %v704, 1.0
    %v706 = vrcp.pop %v705
    %v707 = vmul.f32 1.0, %v706
    %v708 = vmul.f32 %v700, %v592
    %v709 = vmul.f32 %v694, %v701
    %v710 = vadd.f32 %v708, %v709
    %v711 = vtanh.pop %v710
    %v712 = vmul.f32 %v707, %v711
    %s713 = scalar_lea.vmem [#allocation9], 24
    %714 = vst [vmem:[%s713] sm:$0xff] %v712
    %s715 = scalar_lea.vmem [#allocation4], 128
    %v716 = vld [vmem:[%s715] sm:$0xff]
    %v717 = vld [vmem:[%s715 + $0x8] sm:$0xff]
    %v718 = vld [vmem:[%s715 + $0x10] sm:$0xff]
    %v719 = vld [vmem:[%s715 + $0x18] sm:$0xff]
    %v720 = vpack.c.bf16 %v712, %v712
    %721 = vmatprep.subr.bf16.mxu0 %v215
    %722 = vmatpush1.bf16.msra.mxu0 %v214
    %723 = vmatprep.subr.bf16.mxu0 %v211
    %724 = vmatpush1.bf16.msra.mxu0 %v210
    %725 = vmatprep.subr.bf16.mxu0 %v207
    %726 = vmatpush1.bf16.msra.mxu0 %v206
    %727 = vmatprep.subr.bf16.mxu0 %v203
    %728 = vmatpush1.bf16.msra.mxu0 %v202
    %729 = vmatprep.subr.bf16.mxu0 %v199
    %730 = vmatpush1.bf16.msra.mxu0 %v198
    %731 = vmatprep.subr.bf16.mxu0 %v195
    %732 = vmatpush1.bf16.msra.mxu0 %v194
    %733 = vmatprep.subr.bf16.mxu0 %v191
    %734 = vmatpush1.bf16.msra.mxu0 %v190
    %735 = vmatprep.subr.bf16.mxu0 %v187
    %736 = vmatpush1.bf16.msra.mxu0 %v186
    %737 = vmatprep.subr.bf16.mxu0 0
    %738 = vmatpush2.bf16.msra.mxu0 0
    %739 = vmatprep.subr.bf16.mxu0 0
    %740 = vmatpush2.bf16.msra.mxu0 0
    %741 = vmatprep.subr.bf16.mxu0 0
    %742 = vmatpush2.bf16.msra.mxu0 0
    %743 = vmatprep.subr.bf16.mxu0 0
    %744 = vmatpush2.bf16.msra.mxu0 0
    %745 = vmatprep.subr.bf16.mxu0 0
    %746 = vmatpush2.bf16.msra.mxu0 0
    %747 = vmatprep.subr.bf16.mxu0 0
    %748 = vmatpush2.bf16.msra.mxu0 0
    %749 = vmatprep.subr.bf16.mxu0 0
    %750 = vmatpush2.bf16.msra.mxu0 0
    %751 = vmatprep.subr.bf16.mxu0 0
    %752 = vmatpush2.bf16.msra.mxu0 0
    %753 = vmatprep.mubr.bf16.mxu0 0
    %754 = vmatmul.mubr.bf16.gmra.mxu0 %v720
    %v755 = vpop.f32.mrf.mxu0
    %v756 = vadd.f32 0.0, %v755
    %v757 = vpop.f32.mrf.mxu0
    %v758 = vadd.f32 0.0, %v757
    %v759 = vpop.f32.mrf.mxu0
    %v760 = vpop.f32.mrf.mxu0
    %761 = vdwg.mxu0
    %762 = vmatprep.subr.bf16.mxu0 %v217
    %763 = vmatpush1.bf16.msra.mxu0 %v216
    %764 = vmatprep.subr.bf16.mxu0 %v213
    %765 = vmatpush1.bf16.msra.mxu0 %v212
    %766 = vmatprep.subr.bf16.mxu0 %v209
    %767 = vmatpush1.bf16.msra.mxu0 %v208
    %768 = vmatprep.subr.bf16.mxu0 %v205
    %769 = vmatpush1.bf16.msra.mxu0 %v204
    %770 = vmatprep.subr.bf16.mxu0 %v201
    %771 = vmatpush1.bf16.msra.mxu0 %v200
    %772 = vmatprep.subr.bf16.mxu0 %v197
    %773 = vmatpush1.bf16.msra.mxu0 %v196
    %774 = vmatprep.subr.bf16.mxu0 %v193
    %775 = vmatpush1.bf16.msra.mxu0 %v192
    %776 = vmatprep.subr.bf16.mxu0 %v189
    %777 = vmatpush1.bf16.msra.mxu0 %v188
    %778 = vmatprep.subr.bf16.mxu0 0
    %779 = vmatpush2.bf16.msra.mxu0 0
    %780 = vmatprep.subr.bf16.mxu0 0
    %781 = vmatpush2.bf16.msra.mxu0 0
    %782 = vmatprep.subr.bf16.mxu0 0
    %783 = vmatpush2.bf16.msra.mxu0 0
    %784 = vmatprep.subr.bf16.mxu0 0
    %785 = vmatpush2.bf16.msra.mxu0 0
    %786 = vmatprep.subr.bf16.mxu0 0
    %787 = vmatpush2.bf16.msra.mxu0 0
    %788 = vmatprep.subr.bf16.mxu0 0
    %789 = vmatpush2.bf16.msra.mxu0 0
    %790 = vmatprep.subr.bf16.mxu0 0
    %791 = vmatpush2.bf16.msra.mxu0 0
    %792 = vmatprep.subr.bf16.mxu0 0
    %793 = vmatpush2.bf16.msra.mxu0 0
    %794 = vmatprep.mubr.bf16.mxu0 0
    %795 = vmatmul.mubr.bf16.gmra.mxu0 %v720
    %v796 = vpop.f32.mrf.mxu0
    %v797 = vadd.f32 0.0, %v796
    %v798 = vpop.f32.mrf.mxu0
    %v799 = vadd.f32 0.0, %v798
    %v800 = vpop.f32.mrf.mxu0
    %v801 = vpop.f32.mrf.mxu0
    %802 = vdwg.mxu0
    %v803 = vadd.f32 %v716, %v756
    %v804 = vadd.f32 %v717, %v758
    %v805 = vadd.f32 %v718, %v797
    %v806 = vadd.f32 %v719, %v799
    %v807 = vxor.u32 %v803, 2147483648
    %v808 = vmul.f32 %v807, 1.442695
    %v809 = vpow.pop %v808
    %v810 = vadd.f32 %v809, 1.0
    %v811 = vrcp.pop %v810
    %v812 = vmul.f32 1.0, %v811
    %v813 = vxor.u32 %v804, 2147483648
    %v814 = vmul.f32 %v813, 1.442695
    %v815 = vpow.pop %v814
    %v816 = vadd.f32 %v815, 1.0
    %v817 = vrcp.pop %v816
    %v818 = vmul.f32 1.0, %v817
    %v819 = vtanh.pop %v805
    %v820 = vxor.u32 %v806, 2147483648
    %v821 = vmul.f32 %v820, 1.442695
    %v822 = vpow.pop %v821
    %v823 = vadd.f32 %v822, 1.0
    %v824 = vrcp.pop %v823
    %v825 = vmul.f32 1.0, %v824
    %v826 = vmul.f32 %v818, %v710
    %v827 = vmul.f32 %v812, %v819
    %v828 = vadd.f32 %v826, %v827
    %v829 = vtanh.pop %v828
    %v830 = vmul.f32 %v825, %v829
    %s831 = scalar_lea.vmem [#allocation9], 32
    %832 = vst [vmem:[%s831] sm:$0xff] %v830
    %s833 = scalar_lea.vmem [#allocation4], 160
    %v834 = vld [vmem:[%s833] sm:$0xff]
    %v835 = vld [vmem:[%s833 + $0x8] sm:$0xff]
    %v836 = vld [vmem:[%s833 + $0x10] sm:$0xff]
    %v837 = vld [vmem:[%s833 + $0x18] sm:$0xff]
    %v838 = vpack.c.bf16 %v830, %v830
    %839 = vmatprep.subr.bf16.mxu0 %v215
    %840 = vmatpush1.bf16.msra.mxu0 %v214
    %841 = vmatprep.subr.bf16.mxu0 %v211
    %842 = vmatpush1.bf16.msra.mxu0 %v210
    %843 = vmatprep.subr.bf16.mxu0 %v207
    %844 = vmatpush1.bf16.msra.mxu0 %v206
    %845 = vmatprep.subr.bf16.mxu0 %v203
    %846 = vmatpush1.bf16.msra.mxu0 %v202
    %847 = vmatprep.subr.bf16.mxu0 %v199
    %848 = vmatpush1.bf16.msra.mxu0 %v198
    %849 = vmatprep.subr.bf16.mxu0 %v195
    %850 = vmatpush1.bf16.msra.mxu0 %v194
    %851 = vmatprep.subr.bf16.mxu0 %v191
    %852 = vmatpush1.bf16.msra.mxu0 %v190
    %853 = vmatprep.subr.bf16.mxu0 %v187
    %854 = vmatpush1.bf16.msra.mxu0 %v186
    %855 = vmatprep.subr.bf16.mxu0 0
    %856 = vmatpush2.bf16.msra.mxu0 0
    %857 = vmatprep.subr.bf16.mxu0 0
    %858 = vmatpush2.bf16.msra.mxu0 0
    %859 = vmatprep.subr.bf16.mxu0 0
    %860 = vmatpush2.bf16.msra.mxu0 0
    %861 = vmatprep.subr.bf16.mxu0 0
    %862 = vmatpush2.bf16.msra.mxu0 0
    %863 = vmatprep.subr.bf16.mxu0 0
    %864 = vmatpush2.bf16.msra.mxu0 0
    %865 = vmatprep.subr.bf16.mxu0 0
    %866 = vmatpush2.bf16.msra.mxu0 0
    %867 = vmatprep.subr.bf16.mxu0 0
    %868 = vmatpush2.bf16.msra.mxu0 0
    %869 = vmatprep.subr.bf16.mxu0 0
    %870 = vmatpush2.bf16.msra.mxu0 0
    %871 = vmatprep.mubr.bf16.mxu0 0
    %872 = vmatmul.mubr.bf16.gmra.mxu0 %v838
    %v873 = vpop.f32.mrf.mxu0
    %v874 = vadd.f32 0.0, %v873
    %v875 = vpop.f32.mrf.mxu0
    %v876 = vadd.f32 0.0, %v875
    %v877 = vpop.f32.mrf.mxu0
    %v878 = vpop.f32.mrf.mxu0
    %879 = vdwg.mxu0
    %880 = vmatprep.subr.bf16.mxu0 %v217
    %881 = vmatpush1.bf16.msra.mxu0 %v216
    %882 = vmatprep.subr.bf16.mxu0 %v213
    %883 = vmatpush1.bf16.msra.mxu0 %v212
    %884 = vmatprep.subr.bf16.mxu0 %v209
    %885 = vmatpush1.bf16.msra.mxu0 %v208
    %886 = vmatprep.subr.bf16.mxu0 %v205
    %887 = vmatpush1.bf16.msra.mxu0 %v204
    %888 = vmatprep.subr.bf16.mxu0 %v201
    %889 = vmatpush1.bf16.msra.mxu0 %v200
    %890 = vmatprep.subr.bf16.mxu0 %v197
    %891 = vmatpush1.bf16.msra.mxu0 %v196
    %892 = vmatprep.subr.bf16.mxu0 %v193
    %893 = vmatpush1.bf16.msra.mxu0 %v192
    %894 = vmatprep.subr.bf16.mxu0 %v189
    %895 = vmatpush1.bf16.msra.mxu0 %v188
    %896 = vmatprep.subr.bf16.mxu0 0
    %897 = vmatpush2.bf16.msra.mxu0 0
    %898 = vmatprep.subr.bf16.mxu0 0
    %899 = vmatpush2.bf16.msra.mxu0 0
    %900 = vmatprep.subr.bf16.mxu0 0
    %901 = vmatpush2.bf16.msra.mxu0 0
    %902 = vmatprep.subr.bf16.mxu0 0
    %903 = vmatpush2.bf16.msra.mxu0 0
    %904 = vmatprep.subr.bf16.mxu0 0
    %905 = vmatpush2.bf16.msra.mxu0 0
    %906 = vmatprep.subr.bf16.mxu0 0
    %907 = vmatpush2.bf16.msra.mxu0 0
    %908 = vmatprep.subr.bf16.mxu0 0
    %909 = vmatpush2.bf16.msra.mxu0 0
    %910 = vmatprep.subr.bf16.mxu0 0
    %911 = vmatpush2.bf16.msra.mxu0 0
    %912 = vmatprep.mubr.bf16.mxu0 0
    %913 = vmatmul.mubr.bf16.gmra.mxu0 %v838
    %v914 = vpop.f32.mrf.mxu0
    %v915 = vadd.f32 0.0, %v914
    %v916 = vpop.f32.mrf.mxu0
    %v917 = vadd.f32 0.0, %v916
    %v918 = vpop.f32.mrf.mxu0
    %v919 = vpop.f32.mrf.mxu0
    %920 = vdwg.mxu0
    %v921 = vadd.f32 %v834, %v874
    %v922 = vadd.f32 %v835, %v876
    %v923 = vadd.f32 %v836, %v915
    %v924 = vadd.f32 %v837, %v917
    %v925 = vxor.u32 %v921, 2147483648
    %v926 = vmul.f32 %v925, 1.442695
    %v927 = vpow.pop %v926
    %v928 = vadd.f32 %v927, 1.0
    %v929 = vrcp.pop %v928
    %v930 = vmul.f32 1.0, %v929
    %v931 = vxor.u32 %v922, 2147483648
    %v932 = vmul.f32 %v931, 1.442695
    %v933 = vpow.pop %v932
    %v934 = vadd.f32 %v933, 1.0
    %v935 = vrcp.pop %v934
    %v936 = vmul.f32 1.0, %v935
    %v937 = vtanh.pop %v923
    %v938 = vxor.u32 %v924, 2147483648
    %v939 = vmul.f32 %v938, 1.442695
    %v940 = vpow.pop %v939
    %v941 = vadd.f32 %v940, 1.0
    %v942 = vrcp.pop %v941
    %v943 = vmul.f32 1.0, %v942
    %v944 = vmul.f32 %v936, %v828
    %v945 = vmul.f32 %v930, %v937
    %v946 = vadd.f32 %v944, %v945
    %v947 = vtanh.pop %v946
    %v948 = vmul.f32 %v943, %v947
    %s949 = scalar_lea.vmem [#allocation9], 40
    %950 = vst [vmem:[%s949] sm:$0xff] %v948
    %s951 = scalar_lea.vmem [#allocation4], 192
    %v952 = vld [vmem:[%s951] sm:$0xff]
    %v953 = vld [vmem:[%s951 + $0x8] sm:$0xff]
    %v954 = vld [vmem:[%s951 + $0x10] sm:$0xff]
    %v955 = vld [vmem:[%s951 + $0x18] sm:$0xff]
    %v956 = vpack.c.bf16 %v948, %v948
    %957 = vmatprep.subr.bf16.mxu0 %v215
    %958 = vmatpush1.bf16.msra.mxu0 %v214
    %959 = vmatprep.subr.bf16.mxu0 %v211
    %960 = vmatpush1.bf16.msra.mxu0 %v210
    %961 = vmatprep.subr.bf16.mxu0 %v207
    %962 = vmatpush1.bf16.msra.mxu0 %v206
    %963 = vmatprep.subr.bf16.mxu0 %v203
    %964 = vmatpush1.bf16.msra.mxu0 %v202
    %965 = vmatprep.subr.bf16.mxu0 %v199
    %966 = vmatpush1.bf16.msra.mxu0 %v198
    %967 = vmatprep.subr.bf16.mxu0 %v195
    %968 = vmatpush1.bf16.msra.mxu0 %v194
    %969 = vmatprep.subr.bf16.mxu0 %v191
    %970 = vmatpush1.bf16.msra.mxu0 %v190
    %971 = vmatprep.subr.bf16.mxu0 %v187
    %972 = vmatpush1.bf16.msra.mxu0 %v186
    %973 = vmatprep.subr.bf16.mxu0 0
    %974 = vmatpush2.bf16.msra.mxu0 0
    %975 = vmatprep.subr.bf16.mxu0 0
    %976 = vmatpush2.bf16.msra.mxu0 0
    %977 = vmatprep.subr.bf16.mxu0 0
    %978 = vmatpush2.bf16.msra.mxu0 0
    %979 = vmatprep.subr.bf16.mxu0 0
    %980 = vmatpush2.bf16.msra.mxu0 0
    %981 = vmatprep.subr.bf16.mxu0 0
    %982 = vmatpush2.bf16.msra.mxu0 0
    %983 = vmatprep.subr.bf16.mxu0 0
    %984 = vmatpush2.bf16.msra.mxu0 0
    %985 = vmatprep.subr.bf16.mxu0 0
    %986 = vmatpush2.bf16.msra.mxu0 0
    %987 = vmatprep.subr.bf16.mxu0 0
    %988 = vmatpush2.bf16.msra.mxu0 0
    %989 = vmatprep.mubr.bf16.mxu0 0
    %990 = vmatmul.mubr.bf16.gmra.mxu0 %v956
    %v991 = vpop.f32.mrf.mxu0
    %v992 = vadd.f32 0.0, %v991
    %v993 = vpop.f32.mrf.mxu0
    %v994 = vadd.f32 0.0, %v993
    %v995 = vpop.f32.mrf.mxu0
    %v996 = vpop.f32.mrf.mxu0
    %997 = vdwg.mxu0
    %998 = vmatprep.subr.bf16.mxu0 %v217
    %999 = vmatpush1.bf16.msra.mxu0 %v216
    %1000 = vmatprep.subr.bf16.mxu0 %v213
    %1001 = vmatpush1.bf16.msra.mxu0 %v212
    %1002 = vmatprep.subr.bf16.mxu0 %v209
    %1003 = vmatpush1.bf16.msra.mxu0 %v208
    %1004 = vmatprep.subr.bf16.mxu0 %v205
    %1005 = vmatpush1.bf16.msra.mxu0 %v204
    %1006 = vmatprep.subr.bf16.mxu0 %v201
    %1007 = vmatpush1.bf16.msra.mxu0 %v200
    %1008 = vmatprep.subr.bf16.mxu0 %v197
    %1009 = vmatpush1.bf16.msra.mxu0 %v196
    %1010 = vmatprep.subr.bf16.mxu0 %v193
    %1011 = vmatpush1.bf16.msra.mxu0 %v192
    %1012 = vmatprep.subr.bf16.mxu0 %v189
    %1013 = vmatpush1.bf16.msra.mxu0 %v188
    %1014 = vmatprep.subr.bf16.mxu0 0
    %1015 = vmatpush2.bf16.msra.mxu0 0
    %1016 = vmatprep.subr.bf16.mxu0 0
    %1017 = vmatpush2.bf16.msra.mxu0 0
    %1018 = vmatprep.subr.bf16.mxu0 0
    %1019 = vmatpush2.bf16.msra.mxu0 0
    %1020 = vmatprep.subr.bf16.mxu0 0
    %1021 = vmatpush2.bf16.msra.mxu0 0
    %1022 = vmatprep.subr.bf16.mxu0 0
    %1023 = vmatpush2.bf16.msra.mxu0 0
    %1024 = vmatprep.subr.bf16.mxu0 0
    %1025 = vmatpush2.bf16.msra.mxu0 0
    %1026 = vmatprep.subr.bf16.mxu0 0
    %1027 = vmatpush2.bf16.msra.mxu0 0
    %1028 = vmatprep.subr.bf16.mxu0 0
    %1029 = vmatpush2.bf16.msra.mxu0 0
    %1030 = vmatprep.mubr.bf16.mxu0 0
    %1031 = vmatmul.mubr.bf16.gmra.mxu0 %v956
    %v1032 = vpop.f32.mrf.mxu0
    %v1033 = vadd.f32 0.0, %v1032
    %v1034 = vpop.f32.mrf.mxu0
    %v1035 = vadd.f32 0.0, %v1034
    %v1036 = vpop.f32.mrf.mxu0
    %v1037 = vpop.f32.mrf.mxu0
    %1038 = vdwg.mxu0
    %v1039 = vadd.f32 %v952, %v992
    %v1040 = vadd.f32 %v953, %v994
    %v1041 = vadd.f32 %v954, %v1033
    %v1042 = vadd.f32 %v955, %v1035
    %v1043 = vxor.u32 %v1039, 2147483648
    %v1044 = vmul.f32 %v1043, 1.442695
    %v1045 = vpow.pop %v1044
    %v1046 = vadd.f32 %v1045, 1.0
    %v1047 = vrcp.pop %v1046
    %v1048 = vmul.f32 1.0, %v1047
    %v1049 = vxor.u32 %v1040, 2147483648
    %v1050 = vmul.f32 %v1049, 1.442695
    %v1051 = vpow.pop %v1050
    %v1052 = vadd.f32 %v1051, 1.0
    %v1053 = vrcp.pop %v1052
    %v1054 = vmul.f32 1.0, %v1053
    %v1055 = vtanh.pop %v1041
    %v1056 = vxor.u32 %v1042, 2147483648
    %v1057 = vmul.f32 %v1056, 1.442695
    %v1058 = vpow.pop %v1057
    %v1059 = vadd.f32 %v1058, 1.0
    %v1060 = vrcp.pop %v1059
    %v1061 = vmul.f32 1.0, %v1060
    %v1062 = vmul.f32 %v1054, %v946
    %v1063 = vmul.f32 %v1048, %v1055
    %v1064 = vadd.f32 %v1062, %v1063
    %v1065 = vtanh.pop %v1064
    %v1066 = vmul.f32 %v1061, %v1065
    %s1067 = scalar_lea.vmem [#allocation9], 48
    %1068 = vst [vmem:[%s1067] sm:$0xff] %v1066
    %s1069 = scalar_lea.vmem [#allocation4], 224
    %v1070 = vld [vmem:[%s1069] sm:$0xff]
    %v1071 = vld [vmem:[%s1069 + $0x8] sm:$0xff]
    %v1072 = vld [vmem:[%s1069 + $0x10] sm:$0xff]
    %v1073 = vld [vmem:[%s1069 + $0x18] sm:$0xff]
    %v1074 = vpack.c.bf16 %v1066, %v1066
    %1075 = vmatprep.subr.bf16.mxu0 %v215
    %1076 = vmatpush1.bf16.msra.mxu0 %v214
    %1077 = vmatprep.subr.bf16.mxu0 %v211
    %1078 = vmatpush1.bf16.msra.mxu0 %v210
    %1079 = vmatprep.subr.bf16.mxu0 %v207
    %1080 = vmatpush1.bf16.msra.mxu0 %v206
    %1081 = vmatprep.subr.bf16.mxu0 %v203
    %1082 = vmatpush1.bf16.msra.mxu0 %v202
    %1083 = vmatprep.subr.bf16.mxu0 %v199
    %1084 = vmatpush1.bf16.msra.mxu0 %v198
    %1085 = vmatprep.subr.bf16.mxu0 %v195
    %1086 = vmatpush1.bf16.msra.mxu0 %v194
    %1087 = vmatprep.subr.bf16.mxu0 %v191
    %1088 = vmatpush1.bf16.msra.mxu0 %v190
    %1089 = vmatprep.subr.bf16.mxu0 %v187
    %1090 = vmatpush1.bf16.msra.mxu0 %v186
    %1091 = vmatprep.subr.bf16.mxu0 0
    %1092 = vmatpush2.bf16.msra.mxu0 0
    %1093 = vmatprep.subr.bf16.mxu0 0
    %1094 = vmatpush2.bf16.msra.mxu0 0
    %1095 = vmatprep.subr.bf16.mxu0 0
    %1096 = vmatpush2.bf16.msra.mxu0 0
    %1097 = vmatprep.subr.bf16.mxu0 0
    %1098 = vmatpush2.bf16.msra.mxu0 0
    %1099 = vmatprep.subr.bf16.mxu0 0
    %1100 = vmatpush2.bf16.msra.mxu0 0
    %1101 = vmatprep.subr.bf16.mxu0 0
    %1102 = vmatpush2.bf16.msra.mxu0 0
    %1103 = vmatprep.subr.bf16.mxu0 0
    %1104 = vmatpush2.bf16.msra.mxu0 0
    %1105 = vmatprep.subr.bf16.mxu0 0
    %1106 = vmatpush2.bf16.msra.mxu0 0
    %1107 = vmatprep.mubr.bf16.mxu0 0
    %1108 = vmatmul.mubr.bf16.gmra.mxu0 %v1074
    %v1109 = vpop.f32.mrf.mxu0
    %v1110 = vadd.f32 0.0, %v1109
    %v1111 = vpop.f32.mrf.mxu0
    %v1112 = vadd.f32 0.0, %v1111
    %v1113 = vpop.f32.mrf.mxu0
    %v1114 = vpop.f32.mrf.mxu0
    %1115 = vdwg.mxu0
    %1116 = vmatprep.subr.bf16.mxu0 %v217
    %1117 = vmatpush1.bf16.msra.mxu0 %v216
    %1118 = vmatprep.subr.bf16.mxu0 %v213
    %1119 = vmatpush1.bf16.msra.mxu0 %v212
    %1120 = vmatprep.subr.bf16.mxu0 %v209
    %1121 = vmatpush1.bf16.msra.mxu0 %v208
    %1122 = vmatprep.subr.bf16.mxu0 %v205
    %1123 = vmatpush1.bf16.msra.mxu0 %v204
    %1124 = vmatprep.subr.bf16.mxu0 %v201
    %1125 = vmatpush1.bf16.msra.mxu0 %v200
    %1126 = vmatprep.subr.bf16.mxu0 %v197
    %1127 = vmatpush1.bf16.msra.mxu0 %v196
    %1128 = vmatprep.subr.bf16.mxu0 %v193
    %1129 = vmatpush1.bf16.msra.mxu0 %v192
    %1130 = vmatprep.subr.bf16.mxu0 %v189
    %1131 = vmatpush1.bf16.msra.mxu0 %v188
    %1132 = vmatprep.subr.bf16.mxu0 0
    %1133 = vmatpush2.bf16.msra.mxu0 0
    %1134 = vmatprep.subr.bf16.mxu0 0
    %1135 = vmatpush2.bf16.msra.mxu0 0
    %1136 = vmatprep.subr.bf16.mxu0 0
    %1137 = vmatpush2.bf16.msra.mxu0 0
    %1138 = vmatprep.subr.bf16.mxu0 0
    %1139 = vmatpush2.bf16.msra.mxu0 0
    %1140 = vmatprep.subr.bf16.mxu0 0
    %1141 = vmatpush2.bf16.msra.mxu0 0
    %1142 = vmatprep.subr.bf16.mxu0 0
    %1143 = vmatpush2.bf16.msra.mxu0 0
    %1144 = vmatprep.subr.bf16.mxu0 0
    %1145 = vmatpush2.bf16.msra.mxu0 0
    %1146 = vmatprep.subr.bf16.mxu0 0
    %1147 = vmatpush2.bf16.msra.mxu0 0
    %1148 = vmatprep.mubr.bf16.mxu0 0
    %1149 = vmatmul.mubr.bf16.gmra.mxu0 %v1074
    %v1150 = vpop.f32.mrf.mxu0
    %v1151 = vadd.f32 0.0, %v1150
    %v1152 = vpop.f32.mrf.mxu0
    %v1153 = vadd.f32 0.0, %v1152
    %v1154 = vpop.f32.mrf.mxu0
    %v1155 = vpop.f32.mrf.mxu0
    %1156 = vdwg.mxu0
    %v1157 = vadd.f32 %v1070, %v1110
    %v1158 = vadd.f32 %v1071, %v1112
    %v1159 = vadd.f32 %v1072, %v1151
    %v1160 = vadd.f32 %v1073, %v1153
    %v1161 = vxor.u32 %v1157, 2147483648
    %v1162 = vmul.f32 %v1161, 1.442695
    %v1163 = vpow.pop %v1162
    %v1164 = vadd.f32 %v1163, 1.0
    %v1165 = vrcp.pop %v1164
    %v1166 = vmul.f32 1.0, %v1165
    %v1167 = vxor.u32 %v1158, 2147483648
    %v1168 = vmul.f32 %v1167, 1.442695
    %v1169 = vpow.pop %v1168
    %v1170 = vadd.f32 %v1169, 1.0
    %v1171 = vrcp.pop %v1170
    %v1172 = vmul.f32 1.0, %v1171
    %v1173 = vtanh.pop %v1159
    %v1174 = vxor.u32 %v1160, 2147483648
    %v1175 = vmul.f32 %v1174, 1.442695
    %v1176 = vpow.pop %v1175
    %v1177 = vadd.f32 %v1176, 1.0
    %v1178 = vrcp.pop %v1177
    %v1179 = vmul.f32 1.0, %v1178
    %v1180 = vmul.f32 %v1172, %v1064
    %v1181 = vmul.f32 %v1166, %v1173
    %v1182 = vadd.f32 %v1180, %v1181
    %v1183 = vtanh.pop %v1182
    %v1184 = vmul.f32 %v1179, %v1183
    %s1185 = scalar_lea.vmem [#allocation9], 56
    %1186 = vst [vmem:[%s1185] sm:$0xff] %v1184
    %1187 = vst [vmem:[#allocation2] sm:$0xff] %v1184
    %1188 = vst [vmem:[#allocation3] sm:$0xff] %v1182
    // Predicated region
    $region22: #{tpu_custom_call.1} parent=1 // pred_check
      %p1189 = pneg %p45
    $region23: #{tpu_custom_call.1} parent=1 // pred_check_branch
      %1191 = sbr.rel (%p1189) target = $region25
    $region24: #{tpu_custom_call.1} parent=1 // pred_region
      %1192 = vst [vmem:[#allocation10] sm:$0xff] %v1184
      %1193 = vst [vmem:[#allocation12] sm:$0xff] %v1182
    $region25: #{tpu_custom_call.1} parent=1 // pred_fallthru
      _
    // Predicated region
    $region26: #{tpu_custom_call.1} parent=1 // pred_check
      _
    $region27: #{tpu_custom_call.1} parent=1 // pred_check_branch
      %1195 = sbr.rel (0) target = $region29
    $region28: #{tpu_custom_call.1} parent=1 // pred_region
      %s1197 = ssub.s32 1024, 1024
      %1198 = vsyncadd [#allocation6], %s1197
      %s1199 = sshll.u32 [#allocation9], 4
      %s1200 = int_to_ptr.vmem [resolvable:$true] %s1199
      %1205 = dma.vmem_to_hbm [thread:$0]  %s1200, 1024, %s2, [#allocation6], 128, 128, 8
    $region29: #{tpu_custom_call.1} parent=1 // pred_fallthru
      _
    // Predicated region
    $region30: #{tpu_custom_call.1} parent=1 // pred_check
      _
    $region31: #{tpu_custom_call.1} parent=1 // pred_check_branch
      %1207 = sbr.rel (0) target = $region33
    $region32: #{tpu_custom_call.1} parent=1 // pred_region
      %s1209 = ssub.s32 128, 128
      %1210 = vsyncadd [#allocation11], %s1209
      %s1212 = sshll.u32 [#allocation10], 4
      %s1213 = int_to_ptr.vmem [resolvable:$true] %s1212
      %1215 = dma.vmem_to_hbm [thread:$0]  %s1213, 128, %s3, [#allocation11]
    $region33: #{tpu_custom_call.1} parent=1 // pred_fallthru
      _
    // Predicated region
    $region34: #{tpu_custom_call.1} parent=1 // pred_check
      _
    $region35: #{tpu_custom_call.1} parent=1 // pred_check_branch
      %1217 = sbr.rel (0) target = $region37
    $region36: #{tpu_custom_call.1} parent=1 // pred_region
      %s1219 = ssub.s32 128, 128
      %1220 = vsyncadd [#allocation11], %s1219
      %s1222 = sshll.u32 [#allocation12], 4
      %s1223 = int_to_ptr.vmem [resolvable:$true] %s1222
      %1225 = dma.vmem_to_hbm [thread:$0]  %s1223, 128, %s4, [#allocation11]
    $region37: #{tpu_custom_call.1} parent=1 // pred_fallthru
      _
    // Predicated region
    $region38: #{tpu_custom_call.1} parent=1 // pred_check
      _
    $region39: #{tpu_custom_call.1} parent=1 // pred_check_branch
      %1227 = sbr.rel (0) target = $region41
    $region40: #{tpu_custom_call.1} parent=1 // pred_region
      %1228 = dma.done [#allocation6], 1024
    $region41: #{tpu_custom_call.1} parent=1 // pred_fallthru
      _
    // Predicated region
    $region42: #{tpu_custom_call.1} parent=1 // pred_check
      _
    $region43: #{tpu_custom_call.1} parent=1 // pred_check_branch
      %1230 = sbr.rel (0) target = $region45
    $region44: #{tpu_custom_call.1} parent=1 // pred_region
      %1231 = dma.done [#allocation11], 128
    $region45: #{tpu_custom_call.1} parent=1 // pred_fallthru
      _
    // Predicated region
    $region46: #{tpu_custom_call.1} parent=1 // pred_check
      _
    $region47: #{tpu_custom_call.1} parent=1 // pred_check_branch
      %1233 = sbr.rel (0) target = $region49
    $region48: #{tpu_custom_call.1} parent=1 // pred_region
      %1234 = dma.done [#allocation11], 128
    $region49: #{tpu_custom_call.1} parent=1 // pred_fallthru
      _
    %1235 = vsyncpa [#allocation5], 1
    %1236 = vsyncpa [#allocation8], 1
    %1237 = vsyncpa [#allocation6], 1
    %1238 = vsyncpa [#allocation11], 1

</llo_original>
